<compile_context>
chip_gen: v7x
topology: tpu7x:2x2x1
jax: 0.10.0
libtpu: 0.0.40
codegen_flags: <defaults>
</compile_context>

<pallas_src>
from functools import partial

import numpy as np
import jax
import jax.numpy as jnp
from jax.experimental import pallas as pl
from jax.experimental.pallas import tpu as pltpu


def cross_attention_kernel(xl_ref, xd_ref, wl_ref, wd_ref, wo_ref, bias_ref,
                           out_ref, *, batch, seq, num_heads, head_dim):
    B, N, H, hd = batch, seq, num_heads, head_dim
    C = H * hd
    S = 2                                   # the two cross-attention streams

    # bf16 operands feed the MXU at native rate; accumulate in f32.
    xl = xl_ref[...].astype(jnp.bfloat16)                   # (B*N, C)
    xd = xd_ref[...].astype(jnp.bfloat16)                   # (B*N, C)

    # Two flat, lane-dense fused QKV projections (3C = 96 output lanes each).
    # Packed-weight column layout: [ q*scale | k | v ], head-major inside each
    # C-wide group (softmax scale pre-folded into the q columns at pack time).
    qkv_l = jnp.dot(xl, wl_ref[...],
                    preferred_element_type=jnp.float32).reshape(B, N, 3 * C)
    qkv_d = jnp.dot(xd, wd_ref[...],
                    preferred_element_type=jnp.float32).reshape(B, N, 3 * C)

    # Lane -> batch relayout of q/k/v for the head-batched attention einsums:
    # static lane slices (one per stream/head) viewed as (B, N, hd) blocks and
    # stacked on the leading axis.  ~2 vregs of data, lands on the idle XLU.
    def head_block(qkv3, col, h):
        start = col * C + h * hd
        return qkv3[:, :, start:start + hd]                 # (B, N, hd)

    # stream 0 (l->d): q from x_l,  k/v from x_d
    # stream 1 (d->l): q from x_d,  k/v from x_l
    q_parts, k_parts, v_parts = [], [], []
    for qkv_q, qkv_kv in ((qkv_l, qkv_d), (qkv_d, qkv_l)):
        for h in range(H):
            q_parts.append(head_block(qkv_q, 0, h))
            k_parts.append(head_block(qkv_kv, 1, h))
            v_parts.append(head_block(qkv_kv, 2, h))
    # (Z, N, hd) with Z = S*H*B and z = (s*H + h)*B + b
    q = jnp.concatenate(q_parts, axis=0).astype(jnp.bfloat16)
    k = jnp.concatenate(k_parts, axis=0).astype(jnp.bfloat16)
    v = jnp.concatenate(v_parts, axis=0).astype(jnp.bfloat16)

    # Head-batched attention; softmax over keys.  Normalization deferred to
    # after the PV matmul (N*hd multiplies instead of N*N), EUP reciprocal.
    s = jnp.einsum('zqd,zkd->zqk', q, k,
                   preferred_element_type=jnp.float32)       # (Z, N, N)
    m = jnp.max(s, axis=-1, keepdims=True)
    p = jnp.exp(s - m)
    denom = jnp.sum(p, axis=-1, keepdims=True)
    o = jnp.einsum('zqk,zkd->zqd', p.astype(jnp.bfloat16), v,
                   preferred_element_type=jnp.float32)       # (Z, N, hd)
    o = o * pl.reciprocal(denom, approx=True)

    # Batch -> lane relayout of o: columns ordered (stream, head, hd) to match
    # the packed output-projection rows [proj_l ; proj_d].
    o3 = o.reshape(S * H, B * N, hd)     # tile-aligned regroup, order-preserving
    o_flat = jnp.concatenate([o3[g] for g in range(S * H)], axis=-1)  # (B*N, 2C)

    # Single fused output projection for both streams + pre-summed biases.
    out = jnp.dot(o_flat.astype(jnp.bfloat16), wo_ref[...],
                  preferred_element_type=jnp.float32) + bias_ref[...]  # (B*N, C)

    # NOTE: kept (B*N, C); a lane-dense (B, N*C) store at C=32 would add a
    # sublane->lane relayout worth more than the two masked vreg stores saved.
    out_ref[...] = out.astype(out_ref.dtype)


def pack_cross_attention_params(params, num_heads, mxu_dtype=jnp.bfloat16):
    """One-time packing at parameter-load time (NOT in the per-call path).

    params = (wq_l, wk_d, wv_d, wq_d, wk_l, wv_l, wp_l, bp_l, wp_d, bp_d) with
    the nn.Linear weights already transposed to (in, out) layout and the
    projection biases of shape (C,).
    """
    (wql, wkd, wvd, wqd, wkl, wvl, wpl, bpl, wpd, bpd) = params
    C = wql.shape[0]
    assert C % num_heads == 0
    scale = float(C // num_heads) ** -0.5   # qk_scale=None -> head_dim**-0.5

    # x_l @ w_l -> [ q (stream l->d) | k (stream d->l) | v (stream d->l) ]
    w_l = jnp.concatenate([wql * scale, wkl, wvl], axis=1).astype(mxu_dtype)
    # x_d @ w_d -> [ q (stream d->l) | k (stream l->d) | v (stream l->d) ]
    w_d = jnp.concatenate([wqd * scale, wkd, wvd], axis=1).astype(mxu_dtype)
    # Output-projection rows: stream 0 -> proj_l, stream 1 -> proj_d
    # (rows inside each block are already head-major, matching o_flat columns).
    w_o = jnp.concatenate([wpl, wpd], axis=0).astype(mxu_dtype)       # (2C, C)
    bias = (bpl + bpd).reshape(1, C).astype(jnp.float32)              # pre-summed
    return w_l, w_d, w_o, bias


@partial(jax.jit, static_argnames=("num_heads",))
def cross_attention(x_l, x_d, packed_params, num_heads):
    """Pallas forward of CrossAttention: proj_l(attn(l->d)) + proj_d(attn(d->l))."""
    w_l, w_d, w_o, bias = packed_params
    B, N, C = x_l.shape
    Bd, Nd, Cd = x_d.shape
    assert (B, C) == (Bd, Cd) and N == Nd, "final out_l + out_d needs matching shapes"
    assert C % num_heads == 0

    vmem = pl.BlockSpec(memory_space=pltpu.MemorySpace.VMEM)
    kernel = partial(cross_attention_kernel, batch=B, seq=N,
                     num_heads=num_heads, head_dim=C // num_heads)

    # Single invocation, no grid: everything (a few tens of KB) sits in VMEM.
    out_flat = pl.pallas_call(
        kernel,
        out_shape=jax.ShapeDtypeStruct((B * N, C), x_l.dtype),
        in_specs=[vmem] * 6,
        out_specs=vmem,
    )(x_l.reshape(B * N, C), x_d.reshape(B * N, C), w_l, w_d, w_o, bias)
    return out_flat.reshape(B, N, C)


def reference(x_l, x_d, params, num_heads):
    """Pure-JAX f32 reference of the PyTorch module."""
    (wql, wkd, wvd, wqd, wkl, wvl, wpl, bpl, wpd, bpd) = params
    B, _, C = x_l.shape
    hd = C // num_heads
    scale = float(hd) ** -0.5

    def heads(x, w):
        y = x @ w                                       # (B, N, C)
        return y.reshape(B, -1, num_heads, hd).transpose(0, 2, 1, 3)

    def attn(q, k, v):
        s = jnp.einsum('bhqd,bhkd->bhqk', q, k) * scale
        a = jax.nn.softmax(s, axis=-1)
        o = jnp.einsum('bhqk,bhkd->bhqd', a, v)
        return o.transpose(0, 2, 1, 3).reshape(B, -1, C)

    out_l = attn(heads(x_l, wql), heads(x_d, wkd), heads(x_d, wvd)) @ wpl + bpl
    out_d = attn(heads(x_d, wqd), heads(x_l, wkl), heads(x_l, wvl)) @ wpd + bpd
    return out_l + out_d


if __name__ == "__main__":
    B, N, C, H = 2, 8, 32, 4          # batch, seq, dim, num_heads (head_dim = 8)

    key = jax.random.PRNGKey(0)
    keys = jax.random.split(key, 12)

    x_l = jax.random.normal(keys[0], (B, N, C), dtype=jnp.float32)
    x_d = jax.random.normal(keys[1], (B, N, C), dtype=jnp.float32)

    def w(k):   # nn.Linear weight pre-transposed to (in, out); qkv_bias=False
        return 0.02 * jax.random.normal(k, (C, C), dtype=jnp.float32)

    params = (
        w(keys[2]),   # wq_l
        w(keys[3]),   # wk_d
        w(keys[4]),   # wv_d
        w(keys[5]),   # wq_d
        w(keys[6]),   # wk_l
        w(keys[7]),   # wv_l
        w(keys[8]),                                                    # proj_l W
        0.02 * jax.random.normal(keys[9], (C,), dtype=jnp.float32),    # proj_l b
        w(keys[10]),                                                   # proj_d W
        0.02 * jax.random.normal(keys[11], (C,), dtype=jnp.float32),   # proj_d b
    )

    # One-time parameter packing (load-time), then the fast per-call path.
    packed = pack_cross_attention_params(params, num_heads=H)

    out = cross_attention(x_l, x_d, packed, num_heads=H)
    out = jax.block_until_ready(out)

    ref = reference(x_l, x_d, params, num_heads=H)
    # Tolerance covers bf16 MXU operands (all accumulations in f32) and the
    # EUP approximate reciprocal used for the softmax normalization.
    np.testing.assert_allclose(np.asarray(out), np.asarray(ref),
                               rtol=2e-2, atol=3e-3)
    print("KERNEL_OK")
</pallas_src>

<mosaic_0001>
module attributes {stable_mosaic.version = 11 : i64} {
  func.func @cross_attention_kernel(%arg0: memref<16x32xf32, #tpu.memory_space<vmem>>, %arg1: memref<16x32xf32, #tpu.memory_space<vmem>>, %arg2: memref<32x96xbf16, #tpu.memory_space<vmem>>, %arg3: memref<32x96xbf16, #tpu.memory_space<vmem>>, %arg4: memref<64x32xbf16, #tpu.memory_space<vmem>>, %arg5: memref<1x32xf32, #tpu.memory_space<vmem>>, %arg6: memref<16x32xf32, #tpu.memory_space<vmem>>) attributes {dimension_semantics = [], scalar_prefetch = 0 : i64, scratch_operands = 0 : i64, tpu.core_type = #tpu.core_type<tc>} {
    %c0 = arith.constant 0 : index
    %c0_0 = arith.constant 0 : index
    %0 = vector.load %arg0[%c0, %c0_0] : memref<16x32xf32, #tpu.memory_space<vmem>>, vector<16x32xf32>
    %1 = arith.truncf %0 : vector<16x32xf32> to vector<16x32xbf16>
    %c0_1 = arith.constant 0 : index
    %c0_2 = arith.constant 0 : index
    %2 = vector.load %arg1[%c0_1, %c0_2] : memref<16x32xf32, #tpu.memory_space<vmem>>, vector<16x32xf32>
    %3 = arith.truncf %2 : vector<16x32xf32> to vector<16x32xbf16>
    %c0_3 = arith.constant 0 : index
    %c0_4 = arith.constant 0 : index
    %4 = vector.load %arg2[%c0_3, %c0_4] : memref<32x96xbf16, #tpu.memory_space<vmem>>, vector<32x96xbf16>
    %cst = arith.constant dense<0.000000e+00> : vector<16x96xf32>
    %5 = tpu.matmul %1, %4, %cst {dimension_numbers = #tpu.dot_dimension_numbers<[1], [0], [0], [1], [0, 0, 1, 1], [], []>} : vector<16x32xbf16>, vector<32x96xbf16>, vector<16x96xf32> -> vector<16x96xf32>
    %6 = vector.shape_cast %5 : vector<16x96xf32> to vector<2x8x96xf32>
    %c0_5 = arith.constant 0 : index
    %c0_6 = arith.constant 0 : index
    %7 = vector.load %arg3[%c0_5, %c0_6] : memref<32x96xbf16, #tpu.memory_space<vmem>>, vector<32x96xbf16>
    %cst_7 = arith.constant dense<0.000000e+00> : vector<16x96xf32>
    %8 = tpu.matmul %3, %7, %cst_7 {dimension_numbers = #tpu.dot_dimension_numbers<[1], [0], [0], [1], [0, 0, 1, 1], [], []>} : vector<16x32xbf16>, vector<32x96xbf16>, vector<16x96xf32> -> vector<16x96xf32>
    %9 = vector.shape_cast %8 : vector<16x96xf32> to vector<2x8x96xf32>
    %10 = vector.extract_strided_slice %6 {offsets = [0, 0, 0], sizes = [2, 8, 8], strides = [1, 1, 1]} : vector<2x8x96xf32> to vector<2x8x8xf32>
    %11 = vector.extract_strided_slice %9 {offsets = [0, 0, 32], sizes = [2, 8, 8], strides = [1, 1, 1]} : vector<2x8x96xf32> to vector<2x8x8xf32>
    %12 = vector.extract_strided_slice %9 {offsets = [0, 0, 64], sizes = [2, 8, 8], strides = [1, 1, 1]} : vector<2x8x96xf32> to vector<2x8x8xf32>
    %13 = vector.extract_strided_slice %6 {offsets = [0, 0, 8], sizes = [2, 8, 8], strides = [1, 1, 1]} : vector<2x8x96xf32> to vector<2x8x8xf32>
    %14 = vector.extract_strided_slice %9 {offsets = [0, 0, 40], sizes = [2, 8, 8], strides = [1, 1, 1]} : vector<2x8x96xf32> to vector<2x8x8xf32>
    %15 = vector.extract_strided_slice %9 {offsets = [0, 0, 72], sizes = [2, 8, 8], strides = [1, 1, 1]} : vector<2x8x96xf32> to vector<2x8x8xf32>
    %16 = vector.extract_strided_slice %6 {offsets = [0, 0, 16], sizes = [2, 8, 8], strides = [1, 1, 1]} : vector<2x8x96xf32> to vector<2x8x8xf32>
    %17 = vector.extract_strided_slice %9 {offsets = [0, 0, 48], sizes = [2, 8, 8], strides = [1, 1, 1]} : vector<2x8x96xf32> to vector<2x8x8xf32>
    %18 = vector.extract_strided_slice %9 {offsets = [0, 0, 80], sizes = [2, 8, 8], strides = [1, 1, 1]} : vector<2x8x96xf32> to vector<2x8x8xf32>
    %19 = vector.extract_strided_slice %6 {offsets = [0, 0, 24], sizes = [2, 8, 8], strides = [1, 1, 1]} : vector<2x8x96xf32> to vector<2x8x8xf32>
    %20 = vector.extract_strided_slice %9 {offsets = [0, 0, 56], sizes = [2, 8, 8], strides = [1, 1, 1]} : vector<2x8x96xf32> to vector<2x8x8xf32>
    %21 = vector.extract_strided_slice %9 {offsets = [0, 0, 88], sizes = [2, 8, 8], strides = [1, 1, 1]} : vector<2x8x96xf32> to vector<2x8x8xf32>
    %22 = vector.extract_strided_slice %9 {offsets = [0, 0, 0], sizes = [2, 8, 8], strides = [1, 1, 1]} : vector<2x8x96xf32> to vector<2x8x8xf32>
    %23 = vector.extract_strided_slice %6 {offsets = [0, 0, 32], sizes = [2, 8, 8], strides = [1, 1, 1]} : vector<2x8x96xf32> to vector<2x8x8xf32>
    %24 = vector.extract_strided_slice %6 {offsets = [0, 0, 64], sizes = [2, 8, 8], strides = [1, 1, 1]} : vector<2x8x96xf32> to vector<2x8x8xf32>
    %25 = vector.extract_strided_slice %9 {offsets = [0, 0, 8], sizes = [2, 8, 8], strides = [1, 1, 1]} : vector<2x8x96xf32> to vector<2x8x8xf32>
    %26 = vector.extract_strided_slice %6 {offsets = [0, 0, 40], sizes = [2, 8, 8], strides = [1, 1, 1]} : vector<2x8x96xf32> to vector<2x8x8xf32>
    %27 = vector.extract_strided_slice %6 {offsets = [0, 0, 72], sizes = [2, 8, 8], strides = [1, 1, 1]} : vector<2x8x96xf32> to vector<2x8x8xf32>
    %28 = vector.extract_strided_slice %9 {offsets = [0, 0, 16], sizes = [2, 8, 8], strides = [1, 1, 1]} : vector<2x8x96xf32> to vector<2x8x8xf32>
    %29 = vector.extract_strided_slice %6 {offsets = [0, 0, 48], sizes = [2, 8, 8], strides = [1, 1, 1]} : vector<2x8x96xf32> to vector<2x8x8xf32>
    %30 = vector.extract_strided_slice %6 {offsets = [0, 0, 80], sizes = [2, 8, 8], strides = [1, 1, 1]} : vector<2x8x96xf32> to vector<2x8x8xf32>
    %31 = vector.extract_strided_slice %9 {offsets = [0, 0, 24], sizes = [2, 8, 8], strides = [1, 1, 1]} : vector<2x8x96xf32> to vector<2x8x8xf32>
    %32 = vector.extract_strided_slice %6 {offsets = [0, 0, 56], sizes = [2, 8, 8], strides = [1, 1, 1]} : vector<2x8x96xf32> to vector<2x8x8xf32>
    %33 = vector.extract_strided_slice %6 {offsets = [0, 0, 88], sizes = [2, 8, 8], strides = [1, 1, 1]} : vector<2x8x96xf32> to vector<2x8x8xf32>
    %34 = tpu.concatenate %10, %13, %16, %19, %22, %25, %28, %31 in 0 : vector<2x8x8xf32>, vector<2x8x8xf32>, vector<2x8x8xf32>, vector<2x8x8xf32>, vector<2x8x8xf32>, vector<2x8x8xf32>, vector<2x8x8xf32>, vector<2x8x8xf32> -> vector<16x8x8xf32>
    %35 = arith.truncf %34 : vector<16x8x8xf32> to vector<16x8x8xbf16>
    %36 = tpu.concatenate %11, %14, %17, %20, %23, %26, %29, %32 in 0 : vector<2x8x8xf32>, vector<2x8x8xf32>, vector<2x8x8xf32>, vector<2x8x8xf32>, vector<2x8x8xf32>, vector<2x8x8xf32>, vector<2x8x8xf32>, vector<2x8x8xf32> -> vector<16x8x8xf32>
    %37 = arith.truncf %36 : vector<16x8x8xf32> to vector<16x8x8xbf16>
    %38 = tpu.concatenate %12, %15, %18, %21, %24, %27, %30, %33 in 0 : vector<2x8x8xf32>, vector<2x8x8xf32>, vector<2x8x8xf32>, vector<2x8x8xf32>, vector<2x8x8xf32>, vector<2x8x8xf32>, vector<2x8x8xf32>, vector<2x8x8xf32> -> vector<16x8x8xf32>
    %39 = arith.truncf %38 : vector<16x8x8xf32> to vector<16x8x8xbf16>
    "tpu.trace_start"() <{level = 10 : i32, message = "zqd,zkd->zqk"}> : () -> ()
    %cst_8 = arith.constant dense<0.000000e+00> : vector<16x8x8xf32>
    %40 = tpu.matmul %35, %37, %cst_8 {dimension_numbers = #tpu.dot_dimension_numbers<[2], [2], [1], [1], [0, 0, 0, 1, 1, 1], [0], [0]>} : vector<16x8x8xbf16>, vector<16x8x8xbf16>, vector<16x8x8xf32> -> vector<16x8x8xf32>
    "tpu.trace_stop"() : () -> ()
    %cst_9 = arith.constant dense<0xFF800000> : vector<16x8xf32>
    %41 = vector.multi_reduction <maximumf>, %40, %cst_9 [2] : vector<16x8x8xf32> to vector<16x8xf32>
    %42 = vector.shape_cast %41 : vector<16x8xf32> to vector<16x8x1xf32>
    %43 = vector.broadcast %42 : vector<16x8x1xf32> to vector<16x8x8xf32>
    %44 = arith.subf %40, %43 : vector<16x8x8xf32>
    %45 = math.exp %44 : vector<16x8x8xf32>
    %cst_10 = arith.constant dense<0.000000e+00> : vector<16x8xf32>
    %46 = vector.multi_reduction <add>, %45, %cst_10 [2] : vector<16x8x8xf32> to vector<16x8xf32>
    %47 = vector.shape_cast %46 : vector<16x8xf32> to vector<16x8x1xf32>
    %48 = arith.truncf %45 : vector<16x8x8xf32> to vector<16x8x8xbf16>
    "tpu.trace_start"() <{level = 10 : i32, message = "zqk,zkd->zqd"}> : () -> ()
    %cst_11 = arith.constant dense<0.000000e+00> : vector<16x8x8xf32>
    %49 = tpu.matmul %48, %39, %cst_11 {dimension_numbers = #tpu.dot_dimension_numbers<[2], [1], [1], [2], [0, 0, 0, 1, 1, 2], [0], [0]>} : vector<16x8x8xbf16>, vector<16x8x8xbf16>, vector<16x8x8xf32> -> vector<16x8x8xf32>
    "tpu.trace_stop"() : () -> ()
    %50 = tpu.reciprocal %47 {approx = true} : vector<16x8x1xf32> -> vector<16x8x1xf32>
    %51 = vector.broadcast %50 : vector<16x8x1xf32> to vector<16x8x8xf32>
    %52 = arith.mulf %49, %51 : vector<16x8x8xf32>
    %53 = vector.shape_cast %52 : vector<16x8x8xf32> to vector<8x16x8xf32>
    %54 = vector.extract_strided_slice %53 {offsets = [0, 0, 0], sizes = [1, 16, 8], strides = [1, 1, 1]} : vector<8x16x8xf32> to vector<1x16x8xf32>
    %55 = vector.shape_cast %54 : vector<1x16x8xf32> to vector<16x8xf32>
    %56 = vector.extract_strided_slice %53 {offsets = [1, 0, 0], sizes = [1, 16, 8], strides = [1, 1, 1]} : vector<8x16x8xf32> to vector<1x16x8xf32>
    %57 = vector.shape_cast %56 : vector<1x16x8xf32> to vector<16x8xf32>
    %58 = vector.extract_strided_slice %53 {offsets = [2, 0, 0], sizes = [1, 16, 8], strides = [1, 1, 1]} : vector<8x16x8xf32> to vector<1x16x8xf32>
    %59 = vector.shape_cast %58 : vector<1x16x8xf32> to vector<16x8xf32>
    %60 = vector.extract_strided_slice %53 {offsets = [3, 0, 0], sizes = [1, 16, 8], strides = [1, 1, 1]} : vector<8x16x8xf32> to vector<1x16x8xf32>
    %61 = vector.shape_cast %60 : vector<1x16x8xf32> to vector<16x8xf32>
    %62 = vector.extract_strided_slice %53 {offsets = [4, 0, 0], sizes = [1, 16, 8], strides = [1, 1, 1]} : vector<8x16x8xf32> to vector<1x16x8xf32>
    %63 = vector.shape_cast %62 : vector<1x16x8xf32> to vector<16x8xf32>
    %64 = vector.extract_strided_slice %53 {offsets = [5, 0, 0], sizes = [1, 16, 8], strides = [1, 1, 1]} : vector<8x16x8xf32> to vector<1x16x8xf32>
    %65 = vector.shape_cast %64 : vector<1x16x8xf32> to vector<16x8xf32>
    %66 = vector.extract_strided_slice %53 {offsets = [6, 0, 0], sizes = [1, 16, 8], strides = [1, 1, 1]} : vector<8x16x8xf32> to vector<1x16x8xf32>
    %67 = vector.shape_cast %66 : vector<1x16x8xf32> to vector<16x8xf32>
    %68 = vector.extract_strided_slice %53 {offsets = [7, 0, 0], sizes = [1, 16, 8], strides = [1, 1, 1]} : vector<8x16x8xf32> to vector<1x16x8xf32>
    %69 = vector.shape_cast %68 : vector<1x16x8xf32> to vector<16x8xf32>
    %70 = tpu.concatenate %55, %57, %59, %61, %63, %65, %67, %69 in 1 : vector<16x8xf32>, vector<16x8xf32>, vector<16x8xf32>, vector<16x8xf32>, vector<16x8xf32>, vector<16x8xf32>, vector<16x8xf32>, vector<16x8xf32> -> vector<16x64xf32>
    %71 = arith.truncf %70 : vector<16x64xf32> to vector<16x64xbf16>
    %c0_12 = arith.constant 0 : index
    %c0_13 = arith.constant 0 : index
    %72 = vector.load %arg4[%c0_12, %c0_13] : memref<64x32xbf16, #tpu.memory_space<vmem>>, vector<64x32xbf16>
    %cst_14 = arith.constant dense<0.000000e+00> : vector<16x32xf32>
    %73 = tpu.matmul %71, %72, %cst_14 {dimension_numbers = #tpu.dot_dimension_numbers<[1], [0], [0], [1], [0, 0, 1, 1], [], []>} : vector<16x64xbf16>, vector<64x32xbf16>, vector<16x32xf32> -> vector<16x32xf32>
    %c0_15 = arith.constant 0 : index
    %c0_16 = arith.constant 0 : index
    %74 = vector.load %arg5[%c0_15, %c0_16] : memref<1x32xf32, #tpu.memory_space<vmem>>, vector<1x32xf32>
    %75 = vector.broadcast %74 : vector<1x32xf32> to vector<16x32xf32>
    %76 = arith.addf %73, %75 : vector<16x32xf32>
    %c0_17 = arith.constant 0 : index
    %c0_18 = arith.constant 0 : index
    %77 = vector.load %arg6[%c0_17, %c0_18] : memref<16x32xf32, #tpu.memory_space<vmem>>, vector<16x32xf32>
    tpu.vector_store %arg6[%c0_17, %c0_18], %76 {strides = array<i32>} : memref<16x32xf32, #tpu.memory_space<vmem>>, vector<16x32xf32>,
    return
  }
}

</mosaic_0001>

<llo_original>
// kernel: cross_attention.1
$region0: #{cross_attention.1}
  #allocation0 [shape = 'u32[]', space=smem, size = 0x4, offset = 0x4, fixed_abs, tag = 'smem constant byte address 0x4 - core index']
  #allocation1 [shape = 'u32[144,128]{1,0:T(1,128)}', space=vmem, size = 0x12000, scoped, tag = 'internal scratch']
  %s0 = inlined_call_operand.vmem [shape: f32[16,32], index: 0, kind: input, shape index: {}]
  %s1 = inlined_call_operand.vmem [shape: f32[16,32], index: 1, kind: input, shape index: {}]
  %s2 = inlined_call_operand.vmem [shape: bf16[32,96], index: 2, kind: input, shape index: {}]
  %s3 = inlined_call_operand.hbm [shape: bf16[32,96], index: 3, kind: input, shape index: {}]
  %s4 = inlined_call_operand.vmem [shape: bf16[64,32], index: 4, kind: input, shape index: {}]
  %s5 = inlined_call_operand.vmem [shape: f32[1,32], index: 5, kind: input, shape index: {}]
  %s6 = inlined_call_operand.hbm [shape: f32[16,32], index: 6, kind: output, shape index: {}]
  %s7 = sld [smem:[#allocation0]]
  $region38: #{cross_attention.1} parent=0
    _
  %s9 = ssub.s32 1, %s7
  %s10 = scalar_select 0, %s9, %s7
  $region1: #{cross_attention.1} parent=0
    #allocation2 [shape = 'u8[8192]{0}', space=vmem, size = 0x2000, scoped, tag = 'input window, operand 3, single buffered']
    #allocation3 [shape = 's32[1]{0}', space=sflag, size = 0x4, scoped, tag = 'scoped memory for cross_attention.1']
    #allocation4 [shape = 's32[1]{0}', space=sflag, size = 0x4, scoped, tag = 'scoped memory for cross_attention.1']
    #allocation5 [shape = 'u8[8192]{0}', space=vmem, size = 0x2000, scoped, tag = 'output window, operand 0, single buffered']
    %11 = vsyncpa [#allocation3], 0
    %12 = vsyncpa [#allocation4], 0
    // Predicated region
    $region2: #{cross_attention.1} parent=1 // pred_check
      _
    $region3: #{cross_attention.1} parent=1 // pred_check_branch
      %14 = sbr.rel (0) target = $region5
    $region4: #{cross_attention.1} parent=1 // pred_region
      _
    $region5: #{cross_attention.1} parent=1 // pred_fallthru
      _
    // Predicated region
    $region6: #{cross_attention.1} parent=1 // pred_check
      _
    $region7: #{cross_attention.1} parent=1 // pred_check_branch
      %16 = sbr.rel (0) target = $region9
    $region8: #{cross_attention.1} parent=1 // pred_region
      _
    $region9: #{cross_attention.1} parent=1 // pred_fallthru
      _
    // Predicated region
    $region10: #{cross_attention.1} parent=1 // pred_check
      _
    $region11: #{cross_attention.1} parent=1 // pred_check_branch
      %18 = sbr.rel (0) target = $region13
    $region12: #{cross_attention.1} parent=1 // pred_region
      _
    $region13: #{cross_attention.1} parent=1 // pred_fallthru
      _
    // Predicated region
    $region14: #{cross_attention.1} parent=1 // pred_check
      _
    $region15: #{cross_attention.1} parent=1 // pred_check_branch
      %20 = sbr.rel (0) target = $region17
    $region16: #{cross_attention.1} parent=1 // pred_region
      %s22 = ssub.s32 256, 256
      %23 = vsyncadd [#allocation3], %s22
      %s24 = sshll.u32 [#allocation2], 4
      %s25 = int_to_ptr.vmem [resolvable:$true] %s24
      %30 = dma.hbm_to_vmem [thread:$0]  %s3, 256, %s25, [#allocation3], 64, 64, 4
    $region17: #{cross_attention.1} parent=1 // pred_fallthru
      _
    // Predicated region
    $region18: #{cross_attention.1} parent=1 // pred_check
      _
    $region19: #{cross_attention.1} parent=1 // pred_check_branch
      %32 = sbr.rel (0) target = $region21
    $region20: #{cross_attention.1} parent=1 // pred_region
      _
    $region21: #{cross_attention.1} parent=1 // pred_fallthru
      _
    // Predicated region
    $region22: #{cross_attention.1} parent=1 // pred_check
      _
    $region23: #{cross_attention.1} parent=1 // pred_check_branch
      %34 = sbr.rel (0) target = $region25
    $region24: #{cross_attention.1} parent=1 // pred_region
      _
    $region25: #{cross_attention.1} parent=1 // pred_fallthru
      _
    // Predicated region
    $region26: #{cross_attention.1} parent=1 // pred_check
      _
    $region27: #{cross_attention.1} parent=1 // pred_check_branch
      %36 = sbr.rel (0) target = $region29
    $region28: #{cross_attention.1} parent=1 // pred_region
      %37 = dma.done [#allocation3], 256
    $region29: #{cross_attention.1} parent=1 // pred_fallthru
      _
    %v39 = vld [vmem:[%s0] sm:$0xff]
    %v40 = vld [vmem:[%s0 + $0x8] sm:$0xff]
    %v41 = vpack.c.bf16 %v40, %v39
    %v42 = vld [vmem:[%s1] sm:$0xff]
    %v43 = vld [vmem:[%s1 + $0x8] sm:$0xff]
    %v44 = vpack.c.bf16 %v43, %v42
    %v45 = vld [vmem:[%s2] sm:$0xf]
    %v46 = vld [vmem:[%s2 + $0x4] sm:$0xf]
    %v47 = vld [vmem:[%s2 + $0x8] sm:$0xf]
    %v48 = vld [vmem:[%s2 + $0xc] sm:$0xf]
    %v53 = vunpack.c.l.b16 %v45
    %v54 = vunpack.c.l.b16 %v46
    %v55 = vunpack.c.l.b16 %v47
    %v56 = vunpack.c.l.b16 %v48
    %v57 = vpack.c.b16 %v54, %v53
    %v58 = vpack.c.b16 %v56, %v55
    %vm61 = vcmask 261120
    %v63 = vsel %vm61, %v41, 0
    %65 = vmatprep.subr.bf16.mxu0 0
    %66 = vmatpush1.bf16.msra.mxu0 %v57
    %67 = vmatprep.subr.bf16.mxu0 0
    %68 = vmatpush1.bf16.msra.mxu0 %v58
    %69 = vmatprep.subr.bf16.mxu0 0
    %70 = vmatpush1.bf16.msra.mxu0 0
    %71 = vmatprep.subr.bf16.mxu0 0
    %72 = vmatpush1.bf16.msra.mxu0 0
    %73 = vmatprep.subr.bf16.mxu0 0
    %74 = vmatpush1.bf16.msra.mxu0 0
    %75 = vmatprep.subr.bf16.mxu0 0
    %76 = vmatpush1.bf16.msra.mxu0 0
    %77 = vmatprep.subr.bf16.mxu0 0
    %78 = vmatpush1.bf16.msra.mxu0 0
    %79 = vmatprep.subr.bf16.mxu0 0
    %80 = vmatpush1.bf16.msra.mxu0 0
    %81 = vmatprep.subr.bf16.mxu0 0
    %82 = vmatpush1.bf16.msra.mxu0 0
    %83 = vmatprep.subr.bf16.mxu0 0
    %84 = vmatpush1.bf16.msra.mxu0 0
    %85 = vmatprep.subr.bf16.mxu0 0
    %86 = vmatpush1.bf16.msra.mxu0 0
    %87 = vmatprep.subr.bf16.mxu0 0
    %88 = vmatpush1.bf16.msra.mxu0 0
    %89 = vmatprep.subr.bf16.mxu0 0
    %90 = vmatpush1.bf16.msra.mxu0 0
    %91 = vmatprep.subr.bf16.mxu0 0
    %92 = vmatpush1.bf16.msra.mxu0 0
    %93 = vmatprep.subr.bf16.mxu0 0
    %94 = vmatpush1.bf16.msra.mxu0 0
    %95 = vmatprep.subr.bf16.mxu0 0
    %96 = vmatpush1.bf16.msra.mxu0 0
    %97 = vmatprep.mubr.bf16.mxu0 0
    %98 = vmatmul.mubr.bf16.gmra.mrb[0].mxu0 %v63
    %v99 = vpop.f32.mrb[0].mxu0
    %v100 = vadd.f32 0.0, %v99
    %v101 = vpop.f32.mrb[0].mxu0
    %v102 = vpop.f32.mrb[0].mxu0
    %v103 = vadd.f32 0.0, %v102
    %v104 = vpop.f32.mrb[0].mxu0
    %105 = vdwg.mxu0
    %v106 = vld [vmem:[#allocation2] sm:$0xf]
    %v107 = vld [vmem:[#allocation2 + $0x4] sm:$0xf]
    %v108 = vld [vmem:[#allocation2 + $0x8] sm:$0xf]
    %v109 = vld [vmem:[#allocation2 + $0xc] sm:$0xf]
    %v114 = vunpack.c.l.b16 %v106
    %v115 = vunpack.c.l.b16 %v107
    %v116 = vunpack.c.l.b16 %v108
    %v117 = vunpack.c.l.b16 %v109
    %v118 = vpack.c.b16 %v115, %v114
    %v119 = vpack.c.b16 %v117, %v116
    %v123 = vsel %vm61, %v44, 0
    %125 = vmatprep.subr.bf16.mxu0 0
    %126 = vmatpush1.bf16.msra.mxu0 %v118
    %127 = vmatprep.subr.bf16.mxu0 0
    %128 = vmatpush1.bf16.msra.mxu0 %v119
    %129 = vmatprep.subr.bf16.mxu0 0
    %130 = vmatpush1.bf16.msra.mxu0 0
    %131 = vmatprep.subr.bf16.mxu0 0
    %132 = vmatpush1.bf16.msra.mxu0 0
    %133 = vmatprep.subr.bf16.mxu0 0
    %134 = vmatpush1.bf16.msra.mxu0 0
    %135 = vmatprep.subr.bf16.mxu0 0
    %136 = vmatpush1.bf16.msra.mxu0 0
    %137 = vmatprep.subr.bf16.mxu0 0
    %138 = vmatpush1.bf16.msra.mxu0 0
    %139 = vmatprep.subr.bf16.mxu0 0
    %140 = vmatpush1.bf16.msra.mxu0 0
    %141 = vmatprep.subr.bf16.mxu0 0
    %142 = vmatpush1.bf16.msra.mxu0 0
    %143 = vmatprep.subr.bf16.mxu0 0
    %144 = vmatpush1.bf16.msra.mxu0 0
    %145 = vmatprep.subr.bf16.mxu0 0
    %146 = vmatpush1.bf16.msra.mxu0 0
    %147 = vmatprep.subr.bf16.mxu0 0
    %148 = vmatpush1.bf16.msra.mxu0 0
    %149 = vmatprep.subr.bf16.mxu0 0
    %150 = vmatpush1.bf16.msra.mxu0 0
    %151 = vmatprep.subr.bf16.mxu0 0
    %152 = vmatpush1.bf16.msra.mxu0 0
    %153 = vmatprep.subr.bf16.mxu0 0
    %154 = vmatpush1.bf16.msra.mxu0 0
    %155 = vmatprep.subr.bf16.mxu0 0
    %156 = vmatpush1.bf16.msra.mxu0 0
    %157 = vmatprep.mubr.bf16.mxu0 0
    %158 = vmatmul.mubr.bf16.gmra.mrb[0].mxu0 %v123
    %v159 = vpop.f32.mrb[0].mxu0
    %v160 = vadd.f32 0.0, %v159
    %v161 = vpop.f32.mrb[0].mxu0
    %v162 = vpop.f32.mrb[0].mxu0
    %v163 = vadd.f32 0.0, %v162
    %v164 = vpop.f32.mrb[0].mxu0
    %165 = vdwg.mxu0
    %168 = vrot.lane.b32.xlu0 %v100, 120
    %v169 = vpop.permute.xlu0 %168
    %170 = vrot.lane.b32.xlu0 %v103, 120
    %v171 = vpop.permute.xlu0 %170
    %174 = vrot.lane.b32.xlu0 %v100, 112
    %v175 = vpop.permute.xlu0 %174
    %176 = vrot.lane.b32.xlu0 %v103, 112
    %v177 = vpop.permute.xlu0 %176
    %180 = vrot.lane.b32.xlu0 %v100, 104
    %v181 = vpop.permute.xlu0 %180
    %182 = vrot.lane.b32.xlu0 %v103, 104
    %v183 = vpop.permute.xlu0 %182
    %188 = vrot.lane.b32.xlu0 %v160, 120
    %v189 = vpop.permute.xlu0 %188
    %190 = vrot.lane.b32.xlu0 %v163, 120
    %v191 = vpop.permute.xlu0 %190
    %194 = vrot.lane.b32.xlu0 %v160, 112
    %v195 = vpop.permute.xlu0 %194
    %196 = vrot.lane.b32.xlu0 %v163, 112
    %v197 = vpop.permute.xlu0 %196
    %200 = vrot.lane.b32.xlu0 %v160, 104
    %v201 = vpop.permute.xlu0 %200
    %202 = vrot.lane.b32.xlu0 %v163, 104
    %v203 = vpop.permute.xlu0 %202
    %v206 = vpack.c.bf16 %v100, %v100
    %v207 = vpack.c.bf16 %v103, %v103
    %v208 = vpack.c.bf16 %v169, %v169
    %v209 = vpack.c.bf16 %v171, %v171
    %v210 = vpack.c.bf16 %v175, %v175
    %v211 = vpack.c.bf16 %v177, %v177
    %v212 = vpack.c.bf16 %v181, %v181
    %v213 = vpack.c.bf16 %v183, %v183
    %v214 = vpack.c.bf16 %v160, %v160
    %v215 = vpack.c.bf16 %v163, %v163
    %v216 = vpack.c.bf16 %v189, %v189
    %v217 = vpack.c.bf16 %v191, %v191
    %v218 = vpack.c.bf16 %v195, %v195
    %v219 = vpack.c.bf16 %v197, %v197
    %v220 = vpack.c.bf16 %v201, %v201
    %v221 = vpack.c.bf16 %v203, %v203
    %223 = vrot.lane.b32.xlu0 %v214, 96
    %v224 = vpop.permute.xlu0 %223
    %vm225 = vcmask 64512
    %v227 = vsel %vm225, %v206, 0
    %v230 = vsel %vm225, %v224, 0
    %232 = vmatprep.subr.bf16.mxu0 0
    %233 = vmatpush1.bf16.xpose.msra.mxu0 %v230
    %234 = vmatprep.subr.bf16.mxu0 0
    %235 = vmatpush1.bf16.xpose.msra.mxu0 0
    %236 = vmatprep.subr.bf16.mxu0 0
    %237 = vmatpush1.bf16.xpose.msra.mxu0 0
    %238 = vmatprep.subr.bf16.mxu0 0
    %239 = vmatpush1.bf16.xpose.msra.mxu0 0
    %240 = vmatprep.subr.bf16.mxu0 0
    %241 = vmatpush1.bf16.xpose.msra.mxu0 0
    %242 = vmatprep.subr.bf16.mxu0 0
    %243 = vmatpush1.bf16.xpose.msra.mxu0 0
    %244 = vmatprep.subr.bf16.mxu0 0
    %245 = vmatpush1.bf16.xpose.msra.mxu0 0
    %246 = vmatprep.subr.bf16.mxu0 0
    %247 = vmatpush1.bf16.xpose.msra.mxu0 0
    %248 = vmatprep.subr.bf16.mxu0 0
    %249 = vmatpush1.bf16.xpose.msra.mxu0 0
    %250 = vmatprep.subr.bf16.mxu0 0
    %251 = vmatpush1.bf16.xpose.msra.mxu0 0
    %252 = vmatprep.subr.bf16.mxu0 0
    %253 = vmatpush1.bf16.xpose.msra.mxu0 0
    %254 = vmatprep.subr.bf16.mxu0 0
    %255 = vmatpush1.bf16.xpose.msra.mxu0 0
    %256 = vmatprep.subr.bf16.mxu0 0
    %257 = vmatpush1.bf16.xpose.msra.mxu0 0
    %258 = vmatprep.subr.bf16.mxu0 0
    %259 = vmatpush1.bf16.xpose.msra.mxu0 0
    %260 = vmatprep.subr.bf16.mxu0 0
    %261 = vmatpush1.bf16.xpose.msra.mxu0 0
    %262 = vmatprep.subr.bf16.mxu0 0
    %263 = vmatpush1.bf16.xpose.msra.mxu0 0
    %264 = vmatprep.mubr.bf16.mxu0 0
    %265 = vmatmul.mubr.bf16.gmra.mrb[0].mxu0 %v227
    %v266 = vpop.f32.mrb[0].mxu0
    %v267 = vadd.f32 0.0, %v266
    %v268 = vpop.f32.mrb[0].mxu0
    %v269 = vpop.f32.mrb[0].mxu0
    %v270 = vpop.f32.mrb[0].mxu0
    %271 = vdwg.mxu0
    %273 = vrot.lane.b32.xlu0 %v215, 96
    %v274 = vpop.permute.xlu0 %273
    %v276 = vsel %vm225, %v207, 0
    %v279 = vsel %vm225, %v274, 0
    %281 = vmatprep.subr.bf16.mxu0 0
    %282 = vmatpush1.bf16.xpose.msra.mxu0 %v279
    %283 = vmatprep.subr.bf16.mxu0 0
    %284 = vmatpush1.bf16.xpose.msra.mxu0 0
    %285 = vmatprep.subr.bf16.mxu0 0
    %286 = vmatpush1.bf16.xpose.msra.mxu0 0
    %287 = vmatprep.subr.bf16.mxu0 0
    %288 = vmatpush1.bf16.xpose.msra.mxu0 0
    %289 = vmatprep.subr.bf16.mxu0 0
    %290 = vmatpush1.bf16.xpose.msra.mxu0 0
    %291 = vmatprep.subr.bf16.mxu0 0
    %292 = vmatpush1.bf16.xpose.msra.mxu0 0
    %293 = vmatprep.subr.bf16.mxu0 0
    %294 = vmatpush1.bf16.xpose.msra.mxu0 0
    %295 = vmatprep.subr.bf16.mxu0 0
    %296 = vmatpush1.bf16.xpose.msra.mxu0 0
    %297 = vmatprep.subr.bf16.mxu0 0
    %298 = vmatpush1.bf16.xpose.msra.mxu0 0
    %299 = vmatprep.subr.bf16.mxu0 0
    %300 = vmatpush1.bf16.xpose.msra.mxu0 0
    %301 = vmatprep.subr.bf16.mxu0 0
    %302 = vmatpush1.bf16.xpose.msra.mxu0 0
    %303 = vmatprep.subr.bf16.mxu0 0
    %304 = vmatpush1.bf16.xpose.msra.mxu0 0
    %305 = vmatprep.subr.bf16.mxu0 0
    %306 = vmatpush1.bf16.xpose.msra.mxu0 0
    %307 = vmatprep.subr.bf16.mxu0 0
    %308 = vmatpush1.bf16.xpose.msra.mxu0 0
    %309 = vmatprep.subr.bf16.mxu0 0
    %310 = vmatpush1.bf16.xpose.msra.mxu0 0
    %311 = vmatprep.subr.bf16.mxu0 0
    %312 = vmatpush1.bf16.xpose.msra.mxu0 0
    %313 = vmatprep.mubr.bf16.mxu0 0
    %314 = vmatmul.mubr.bf16.gmra.mrb[0].mxu0 %v276
    %v315 = vpop.f32.mrb[0].mxu0
    %v316 = vadd.f32 0.0, %v315
    %v317 = vpop.f32.mrb[0].mxu0
    %v318 = vpop.f32.mrb[0].mxu0
    %v319 = vpop.f32.mrb[0].mxu0
    %320 = vdwg.mxu0
    %322 = vrot.lane.b32.xlu0 %v216, 96
    %v323 = vpop.permute.xlu0 %322
    %v325 = vsel %vm225, %v208, 0
    %v328 = vsel %vm225, %v323, 0
    %330 = vmatprep.subr.bf16.mxu0 0
    %331 = vmatpush1.bf16.xpose.msra.mxu0 %v328
    %332 = vmatprep.subr.bf16.mxu0 0
    %333 = vmatpush1.bf16.xpose.msra.mxu0 0
    %334 = vmatprep.subr.bf16.mxu0 0
    %335 = vmatpush1.bf16.xpose.msra.mxu0 0
    %336 = vmatprep.subr.bf16.mxu0 0
    %337 = vmatpush1.bf16.xpose.msra.mxu0 0
    %338 = vmatprep.subr.bf16.mxu0 0
    %339 = vmatpush1.bf16.xpose.msra.mxu0 0
    %340 = vmatprep.subr.bf16.mxu0 0
    %341 = vmatpush1.bf16.xpose.msra.mxu0 0
    %342 = vmatprep.subr.bf16.mxu0 0
    %343 = vmatpush1.bf16.xpose.msra.mxu0 0
    %344 = vmatprep.subr.bf16.mxu0 0
    %345 = vmatpush1.bf16.xpose.msra.mxu0 0
    %346 = vmatprep.subr.bf16.mxu0 0
    %347 = vmatpush1.bf16.xpose.msra.mxu0 0
    %348 = vmatprep.subr.bf16.mxu0 0
    %349 = vmatpush1.bf16.xpose.msra.mxu0 0
    %350 = vmatprep.subr.bf16.mxu0 0
    %351 = vmatpush1.bf16.xpose.msra.mxu0 0
    %352 = vmatprep.subr.bf16.mxu0 0
    %353 = vmatpush1.bf16.xpose.msra.mxu0 0
    %354 = vmatprep.subr.bf16.mxu0 0
    %355 = vmatpush1.bf16.xpose.msra.mxu0 0
    %356 = vmatprep.subr.bf16.mxu0 0
    %357 = vmatpush1.bf16.xpose.msra.mxu0 0
    %358 = vmatprep.subr.bf16.mxu0 0
    %359 = vmatpush1.bf16.xpose.msra.mxu0 0
    %360 = vmatprep.subr.bf16.mxu0 0
    %361 = vmatpush1.bf16.xpose.msra.mxu0 0
    %362 = vmatprep.mubr.bf16.mxu0 0
    %363 = vmatmul.mubr.bf16.gmra.mrb[0].mxu0 %v325
    %v364 = vpop.f32.mrb[0].mxu0
    %v365 = vadd.f32 0.0, %v364
    %v366 = vpop.f32.mrb[0].mxu0
    %v367 = vpop.f32.mrb[0].mxu0
    %v368 = vpop.f32.mrb[0].mxu0
    %369 = vdwg.mxu0
    %371 = vrot.lane.b32.xlu0 %v217, 96
    %v372 = vpop.permute.xlu0 %371
    %v374 = vsel %vm225, %v209, 0
    %v377 = vsel %vm225, %v372, 0
    %379 = vmatprep.subr.bf16.mxu0 0
    %380 = vmatpush1.bf16.xpose.msra.mxu0 %v377
    %381 = vmatprep.subr.bf16.mxu0 0
    %382 = vmatpush1.bf16.xpose.msra.mxu0 0
    %383 = vmatprep.subr.bf16.mxu0 0
    %384 = vmatpush1.bf16.xpose.msra.mxu0 0
    %385 = vmatprep.subr.bf16.mxu0 0
    %386 = vmatpush1.bf16.xpose.msra.mxu0 0
    %387 = vmatprep.subr.bf16.mxu0 0
    %388 = vmatpush1.bf16.xpose.msra.mxu0 0
    %389 = vmatprep.subr.bf16.mxu0 0
    %390 = vmatpush1.bf16.xpose.msra.mxu0 0
    %391 = vmatprep.subr.bf16.mxu0 0
    %392 = vmatpush1.bf16.xpose.msra.mxu0 0
    %393 = vmatprep.subr.bf16.mxu0 0
    %394 = vmatpush1.bf16.xpose.msra.mxu0 0
    %395 = vmatprep.subr.bf16.mxu0 0
    %396 = vmatpush1.bf16.xpose.msra.mxu0 0
    %397 = vmatprep.subr.bf16.mxu0 0
    %398 = vmatpush1.bf16.xpose.msra.mxu0 0
    %399 = vmatprep.subr.bf16.mxu0 0
    %400 = vmatpush1.bf16.xpose.msra.mxu0 0
    %401 = vmatprep.subr.bf16.mxu0 0
    %402 = vmatpush1.bf16.xpose.msra.mxu0 0
    %403 = vmatprep.subr.bf16.mxu0 0
    %404 = vmatpush1.bf16.xpose.msra.mxu0 0
    %405 = vmatprep.subr.bf16.mxu0 0
    %406 = vmatpush1.bf16.xpose.msra.mxu0 0
    %407 = vmatprep.subr.bf16.mxu0 0
    %408 = vmatpush1.bf16.xpose.msra.mxu0 0
    %409 = vmatprep.subr.bf16.mxu0 0
    %410 = vmatpush1.bf16.xpose.msra.mxu0 0
    %411 = vmatprep.mubr.bf16.mxu0 0
    %412 = vmatmul.mubr.bf16.gmra.mrb[0].mxu0 %v374
    %v413 = vpop.f32.mrb[0].mxu0
    %v414 = vadd.f32 0.0, %v413
    %v415 = vpop.f32.mrb[0].mxu0
    %v416 = vpop.f32.mrb[0].mxu0
    %v417 = vpop.f32.mrb[0].mxu0
    %418 = vdwg.mxu0
    %420 = vrot.lane.b32.xlu0 %v218, 96
    %v421 = vpop.permute.xlu0 %420
    %v423 = vsel %vm225, %v210, 0
    %v426 = vsel %vm225, %v421, 0
    %428 = vmatprep.subr.bf16.mxu0 0
    %429 = vmatpush1.bf16.xpose.msra.mxu0 %v426
    %430 = vmatprep.subr.bf16.mxu0 0
    %431 = vmatpush1.bf16.xpose.msra.mxu0 0
    %432 = vmatprep.subr.bf16.mxu0 0
    %433 = vmatpush1.bf16.xpose.msra.mxu0 0
    %434 = vmatprep.subr.bf16.mxu0 0
    %435 = vmatpush1.bf16.xpose.msra.mxu0 0
    %436 = vmatprep.subr.bf16.mxu0 0
    %437 = vmatpush1.bf16.xpose.msra.mxu0 0
    %438 = vmatprep.subr.bf16.mxu0 0
    %439 = vmatpush1.bf16.xpose.msra.mxu0 0
    %440 = vmatprep.subr.bf16.mxu0 0
    %441 = vmatpush1.bf16.xpose.msra.mxu0 0
    %442 = vmatprep.subr.bf16.mxu0 0
    %443 = vmatpush1.bf16.xpose.msra.mxu0 0
    %444 = vmatprep.subr.bf16.mxu0 0
    %445 = vmatpush1.bf16.xpose.msra.mxu0 0
    %446 = vmatprep.subr.bf16.mxu0 0
    %447 = vmatpush1.bf16.xpose.msra.mxu0 0
    %448 = vmatprep.subr.bf16.mxu0 0
    %449 = vmatpush1.bf16.xpose.msra.mxu0 0
    %450 = vmatprep.subr.bf16.mxu0 0
    %451 = vmatpush1.bf16.xpose.msra.mxu0 0
    %452 = vmatprep.subr.bf16.mxu0 0
    %453 = vmatpush1.bf16.xpose.msra.mxu0 0
    %454 = vmatprep.subr.bf16.mxu0 0
    %455 = vmatpush1.bf16.xpose.msra.mxu0 0
    %456 = vmatprep.subr.bf16.mxu0 0
    %457 = vmatpush1.bf16.xpose.msra.mxu0 0
    %458 = vmatprep.subr.bf16.mxu0 0
    %459 = vmatpush1.bf16.xpose.msra.mxu0 0
    %460 = vmatprep.mubr.bf16.mxu0 0
    %461 = vmatmul.mubr.bf16.gmra.mrb[0].mxu0 %v423
    %v462 = vpop.f32.mrb[0].mxu0
    %v463 = vadd.f32 0.0, %v462
    %v464 = vpop.f32.mrb[0].mxu0
    %v465 = vpop.f32.mrb[0].mxu0
    %v466 = vpop.f32.mrb[0].mxu0
    %467 = vdwg.mxu0
    %469 = vrot.lane.b32.xlu0 %v219, 96
    %v470 = vpop.permute.xlu0 %469
    %v472 = vsel %vm225, %v211, 0
    %v475 = vsel %vm225, %v470, 0
    %477 = vmatprep.subr.bf16.mxu0 0
    %478 = vmatpush1.bf16.xpose.msra.mxu0 %v475
    %479 = vmatprep.subr.bf16.mxu0 0
    %480 = vmatpush1.bf16.xpose.msra.mxu0 0
    %481 = vmatprep.subr.bf16.mxu0 0
    %482 = vmatpush1.bf16.xpose.msra.mxu0 0
    %483 = vmatprep.subr.bf16.mxu0 0
    %484 = vmatpush1.bf16.xpose.msra.mxu0 0
    %485 = vmatprep.subr.bf16.mxu0 0
    %486 = vmatpush1.bf16.xpose.msra.mxu0 0
    %487 = vmatprep.subr.bf16.mxu0 0
    %488 = vmatpush1.bf16.xpose.msra.mxu0 0
    %489 = vmatprep.subr.bf16.mxu0 0
    %490 = vmatpush1.bf16.xpose.msra.mxu0 0
    %491 = vmatprep.subr.bf16.mxu0 0
    %492 = vmatpush1.bf16.xpose.msra.mxu0 0
    %493 = vmatprep.subr.bf16.mxu0 0
    %494 = vmatpush1.bf16.xpose.msra.mxu0 0
    %495 = vmatprep.subr.bf16.mxu0 0
    %496 = vmatpush1.bf16.xpose.msra.mxu0 0
    %497 = vmatprep.subr.bf16.mxu0 0
    %498 = vmatpush1.bf16.xpose.msra.mxu0 0
    %499 = vmatprep.subr.bf16.mxu0 0
    %500 = vmatpush1.bf16.xpose.msra.mxu0 0
    %501 = vmatprep.subr.bf16.mxu0 0
    %502 = vmatpush1.bf16.xpose.msra.mxu0 0
    %503 = vmatprep.subr.bf16.mxu0 0
    %504 = vmatpush1.bf16.xpose.msra.mxu0 0
    %505 = vmatprep.subr.bf16.mxu0 0
    %506 = vmatpush1.bf16.xpose.msra.mxu0 0
    %507 = vmatprep.subr.bf16.mxu0 0
    %508 = vmatpush1.bf16.xpose.msra.mxu0 0
    %509 = vmatprep.mubr.bf16.mxu0 0
    %510 = vmatmul.mubr.bf16.gmra.mrb[0].mxu0 %v472
    %v511 = vpop.f32.mrb[0].mxu0
    %v512 = vadd.f32 0.0, %v511
    %v513 = vpop.f32.mrb[0].mxu0
    %v514 = vpop.f32.mrb[0].mxu0
    %v515 = vpop.f32.mrb[0].mxu0
    %516 = vdwg.mxu0
    %518 = vrot.lane.b32.xlu0 %v220, 96
    %v519 = vpop.permute.xlu0 %518
    %v521 = vsel %vm225, %v212, 0
    %v524 = vsel %vm225, %v519, 0
    %526 = vmatprep.subr.bf16.mxu0 0
    %527 = vmatpush1.bf16.xpose.msra.mxu0 %v524
    %528 = vmatprep.subr.bf16.mxu0 0
    %529 = vmatpush1.bf16.xpose.msra.mxu0 0
    %530 = vmatprep.subr.bf16.mxu0 0
    %531 = vmatpush1.bf16.xpose.msra.mxu0 0
    %532 = vmatprep.subr.bf16.mxu0 0
    %533 = vmatpush1.bf16.xpose.msra.mxu0 0
    %534 = vmatprep.subr.bf16.mxu0 0
    %535 = vmatpush1.bf16.xpose.msra.mxu0 0
    %536 = vmatprep.subr.bf16.mxu0 0
    %537 = vmatpush1.bf16.xpose.msra.mxu0 0
    %538 = vmatprep.subr.bf16.mxu0 0
    %539 = vmatpush1.bf16.xpose.msra.mxu0 0
    %540 = vmatprep.subr.bf16.mxu0 0
    %541 = vmatpush1.bf16.xpose.msra.mxu0 0
    %542 = vmatprep.subr.bf16.mxu0 0
    %543 = vmatpush1.bf16.xpose.msra.mxu0 0
    %544 = vmatprep.subr.bf16.mxu0 0
    %545 = vmatpush1.bf16.xpose.msra.mxu0 0
    %546 = vmatprep.subr.bf16.mxu0 0
    %547 = vmatpush1.bf16.xpose.msra.mxu0 0
    %548 = vmatprep.subr.bf16.mxu0 0
    %549 = vmatpush1.bf16.xpose.msra.mxu0 0
    %550 = vmatprep.subr.bf16.mxu0 0
    %551 = vmatpush1.bf16.xpose.msra.mxu0 0
    %552 = vmatprep.subr.bf16.mxu0 0
    %553 = vmatpush1.bf16.xpose.msra.mxu0 0
    %554 = vmatprep.subr.bf16.mxu0 0
    %555 = vmatpush1.bf16.xpose.msra.mxu0 0
    %556 = vmatprep.subr.bf16.mxu0 0
    %557 = vmatpush1.bf16.xpose.msra.mxu0 0
    %558 = vmatprep.mubr.bf16.mxu0 0
    %559 = vmatmul.mubr.bf16.gmra.mrb[0].mxu0 %v521
    %v560 = vpop.f32.mrb[0].mxu0
    %v561 = vadd.f32 0.0, %v560
    %v562 = vpop.f32.mrb[0].mxu0
    %v563 = vpop.f32.mrb[0].mxu0
    %v564 = vpop.f32.mrb[0].mxu0
    %565 = vdwg.mxu0
    %567 = vrot.lane.b32.xlu0 %v221, 96
    %v568 = vpop.permute.xlu0 %567
    %v570 = vsel %vm225, %v213, 0
    %v573 = vsel %vm225, %v568, 0
    %575 = vmatprep.subr.bf16.mxu0 0
    %576 = vmatpush1.bf16.xpose.msra.mxu0 %v573
    %577 = vmatprep.subr.bf16.mxu0 0
    %578 = vmatpush1.bf16.xpose.msra.mxu0 0
    %579 = vmatprep.subr.bf16.mxu0 0
    %580 = vmatpush1.bf16.xpose.msra.mxu0 0
    %581 = vmatprep.subr.bf16.mxu0 0
    %582 = vmatpush1.bf16.xpose.msra.mxu0 0
    %583 = vmatprep.subr.bf16.mxu0 0
    %584 = vmatpush1.bf16.xpose.msra.mxu0 0
    %585 = vmatprep.subr.bf16.mxu0 0
    %586 = vmatpush1.bf16.xpose.msra.mxu0 0
    %587 = vmatprep.subr.bf16.mxu0 0
    %588 = vmatpush1.bf16.xpose.msra.mxu0 0
    %589 = vmatprep.subr.bf16.mxu0 0
    %590 = vmatpush1.bf16.xpose.msra.mxu0 0
    %591 = vmatprep.subr.bf16.mxu0 0
    %592 = vmatpush1.bf16.xpose.msra.mxu0 0
    %593 = vmatprep.subr.bf16.mxu0 0
    %594 = vmatpush1.bf16.xpose.msra.mxu0 0
    %595 = vmatprep.subr.bf16.mxu0 0
    %596 = vmatpush1.bf16.xpose.msra.mxu0 0
    %597 = vmatprep.subr.bf16.mxu0 0
    %598 = vmatpush1.bf16.xpose.msra.mxu0 0
    %599 = vmatprep.subr.bf16.mxu0 0
    %600 = vmatpush1.bf16.xpose.msra.mxu0 0
    %601 = vmatprep.subr.bf16.mxu0 0
    %602 = vmatpush1.bf16.xpose.msra.mxu0 0
    %603 = vmatprep.subr.bf16.mxu0 0
    %604 = vmatpush1.bf16.xpose.msra.mxu0 0
    %605 = vmatprep.subr.bf16.mxu0 0
    %606 = vmatpush1.bf16.xpose.msra.mxu0 0
    %607 = vmatprep.mubr.bf16.mxu0 0
    %608 = vmatmul.mubr.bf16.gmra.mrb[0].mxu0 %v570
    %v609 = vpop.f32.mrb[0].mxu0
    %v610 = vadd.f32 0.0, %v609
    %v611 = vpop.f32.mrb[0].mxu0
    %v612 = vpop.f32.mrb[0].mxu0
    %v613 = vpop.f32.mrb[0].mxu0
    %614 = vdwg.mxu0
    %616 = vrot.lane.b32.xlu0 %v206, 96
    %v617 = vpop.permute.xlu0 %616
    %v619 = vsel %vm225, %v214, 0
    %v622 = vsel %vm225, %v617, 0
    %624 = vmatprep.subr.bf16.mxu0 0
    %625 = vmatpush1.bf16.xpose.msra.mxu0 %v622
    %626 = vmatprep.subr.bf16.mxu0 0
    %627 = vmatpush1.bf16.xpose.msra.mxu0 0
    %628 = vmatprep.subr.bf16.mxu0 0
    %629 = vmatpush1.bf16.xpose.msra.mxu0 0
    %630 = vmatprep.subr.bf16.mxu0 0
    %631 = vmatpush1.bf16.xpose.msra.mxu0 0
    %632 = vmatprep.subr.bf16.mxu0 0
    %633 = vmatpush1.bf16.xpose.msra.mxu0 0
    %634 = vmatprep.subr.bf16.mxu0 0
    %635 = vmatpush1.bf16.xpose.msra.mxu0 0
    %636 = vmatprep.subr.bf16.mxu0 0
    %637 = vmatpush1.bf16.xpose.msra.mxu0 0
    %638 = vmatprep.subr.bf16.mxu0 0
    %639 = vmatpush1.bf16.xpose.msra.mxu0 0
    %640 = vmatprep.subr.bf16.mxu0 0
    %641 = vmatpush1.bf16.xpose.msra.mxu0 0
    %642 = vmatprep.subr.bf16.mxu0 0
    %643 = vmatpush1.bf16.xpose.msra.mxu0 0
    %644 = vmatprep.subr.bf16.mxu0 0
    %645 = vmatpush1.bf16.xpose.msra.mxu0 0
    %646 = vmatprep.subr.bf16.mxu0 0
    %647 = vmatpush1.bf16.xpose.msra.mxu0 0
    %648 = vmatprep.subr.bf16.mxu0 0
    %649 = vmatpush1.bf16.xpose.msra.mxu0 0
    %650 = vmatprep.subr.bf16.mxu0 0
    %651 = vmatpush1.bf16.xpose.msra.mxu0 0
    %652 = vmatprep.subr.bf16.mxu0 0
    %653 = vmatpush1.bf16.xpose.msra.mxu0 0
    %654 = vmatprep.subr.bf16.mxu0 0
    %655 = vmatpush1.bf16.xpose.msra.mxu0 0
    %656 = vmatprep.mubr.bf16.mxu0 0
    %657 = vmatmul.mubr.bf16.gmra.mrb[0].mxu0 %v619
    %v658 = vpop.f32.mrb[0].mxu0
    %v659 = vadd.f32 0.0, %v658
    %v660 = vpop.f32.mrb[0].mxu0
    %v661 = vpop.f32.mrb[0].mxu0
    %v662 = vpop.f32.mrb[0].mxu0
    %663 = vdwg.mxu0
    %665 = vrot.lane.b32.xlu0 %v207, 96
    %v666 = vpop.permute.xlu0 %665
    %v668 = vsel %vm225, %v215, 0
    %v671 = vsel %vm225, %v666, 0
    %673 = vmatprep.subr.bf16.mxu0 0
    %674 = vmatpush1.bf16.xpose.msra.mxu0 %v671
    %675 = vmatprep.subr.bf16.mxu0 0
    %676 = vmatpush1.bf16.xpose.msra.mxu0 0
    %677 = vmatprep.subr.bf16.mxu0 0
    %678 = vmatpush1.bf16.xpose.msra.mxu0 0
    %679 = vmatprep.subr.bf16.mxu0 0
    %680 = vmatpush1.bf16.xpose.msra.mxu0 0
    %681 = vmatprep.subr.bf16.mxu0 0
    %682 = vmatpush1.bf16.xpose.msra.mxu0 0
    %683 = vmatprep.subr.bf16.mxu0 0
    %684 = vmatpush1.bf16.xpose.msra.mxu0 0
    %685 = vmatprep.subr.bf16.mxu0 0
    %686 = vmatpush1.bf16.xpose.msra.mxu0 0
    %687 = vmatprep.subr.bf16.mxu0 0
    %688 = vmatpush1.bf16.xpose.msra.mxu0 0
    %689 = vmatprep.subr.bf16.mxu0 0
    %690 = vmatpush1.bf16.xpose.msra.mxu0 0
    %691 = vmatprep.subr.bf16.mxu0 0
    %692 = vmatpush1.bf16.xpose.msra.mxu0 0
    %693 = vmatprep.subr.bf16.mxu0 0
    %694 = vmatpush1.bf16.xpose.msra.mxu0 0
    %695 = vmatprep.subr.bf16.mxu0 0
    %696 = vmatpush1.bf16.xpose.msra.mxu0 0
    %697 = vmatprep.subr.bf16.mxu0 0
    %698 = vmatpush1.bf16.xpose.msra.mxu0 0
    %699 = vmatprep.subr.bf16.mxu0 0
    %700 = vmatpush1.bf16.xpose.msra.mxu0 0
    %701 = vmatprep.subr.bf16.mxu0 0
    %702 = vmatpush1.bf16.xpose.msra.mxu0 0
    %703 = vmatprep.subr.bf16.mxu0 0
    %704 = vmatpush1.bf16.xpose.msra.mxu0 0
    %705 = vmatprep.mubr.bf16.mxu0 0
    %706 = vmatmul.mubr.bf16.gmra.mrb[0].mxu0 %v668
    %v707 = vpop.f32.mrb[0].mxu0
    %v708 = vadd.f32 0.0, %v707
    %v709 = vpop.f32.mrb[0].mxu0
    %v710 = vpop.f32.mrb[0].mxu0
    %v711 = vpop.f32.mrb[0].mxu0
    %712 = vdwg.mxu0
    %714 = vrot.lane.b32.xlu0 %v208, 96
    %v715 = vpop.permute.xlu0 %714
    %v717 = vsel %vm225, %v216, 0
    %v720 = vsel %vm225, %v715, 0
    %722 = vmatprep.subr.bf16.mxu0 0
    %723 = vmatpush1.bf16.xpose.msra.mxu0 %v720
    %724 = vmatprep.subr.bf16.mxu0 0
    %725 = vmatpush1.bf16.xpose.msra.mxu0 0
    %726 = vmatprep.subr.bf16.mxu0 0
    %727 = vmatpush1.bf16.xpose.msra.mxu0 0
    %728 = vmatprep.subr.bf16.mxu0 0
    %729 = vmatpush1.bf16.xpose.msra.mxu0 0
    %730 = vmatprep.subr.bf16.mxu0 0
    %731 = vmatpush1.bf16.xpose.msra.mxu0 0
    %732 = vmatprep.subr.bf16.mxu0 0
    %733 = vmatpush1.bf16.xpose.msra.mxu0 0
    %734 = vmatprep.subr.bf16.mxu0 0
    %735 = vmatpush1.bf16.xpose.msra.mxu0 0
    %736 = vmatprep.subr.bf16.mxu0 0
    %737 = vmatpush1.bf16.xpose.msra.mxu0 0
    %738 = vmatprep.subr.bf16.mxu0 0
    %739 = vmatpush1.bf16.xpose.msra.mxu0 0
    %740 = vmatprep.subr.bf16.mxu0 0
    %741 = vmatpush1.bf16.xpose.msra.mxu0 0
    %742 = vmatprep.subr.bf16.mxu0 0
    %743 = vmatpush1.bf16.xpose.msra.mxu0 0
    %744 = vmatprep.subr.bf16.mxu0 0
    %745 = vmatpush1.bf16.xpose.msra.mxu0 0
    %746 = vmatprep.subr.bf16.mxu0 0
    %747 = vmatpush1.bf16.xpose.msra.mxu0 0
    %748 = vmatprep.subr.bf16.mxu0 0
    %749 = vmatpush1.bf16.xpose.msra.mxu0 0
    %750 = vmatprep.subr.bf16.mxu0 0
    %751 = vmatpush1.bf16.xpose.msra.mxu0 0
    %752 = vmatprep.subr.bf16.mxu0 0
    %753 = vmatpush1.bf16.xpose.msra.mxu0 0
    %754 = vmatprep.mubr.bf16.mxu0 0
    %755 = vmatmul.mubr.bf16.gmra.mrb[0].mxu0 %v717
    %v756 = vpop.f32.mrb[0].mxu0
    %v757 = vadd.f32 0.0, %v756
    %v758 = vpop.f32.mrb[0].mxu0
    %v759 = vpop.f32.mrb[0].mxu0
    %v760 = vpop.f32.mrb[0].mxu0
    %761 = vdwg.mxu0
    %763 = vrot.lane.b32.xlu0 %v209, 96
    %v764 = vpop.permute.xlu0 %763
    %v766 = vsel %vm225, %v217, 0
    %v769 = vsel %vm225, %v764, 0
    %771 = vmatprep.subr.bf16.mxu0 0
    %772 = vmatpush1.bf16.xpose.msra.mxu0 %v769
    %773 = vmatprep.subr.bf16.mxu0 0
    %774 = vmatpush1.bf16.xpose.msra.mxu0 0
    %775 = vmatprep.subr.bf16.mxu0 0
    %776 = vmatpush1.bf16.xpose.msra.mxu0 0
    %777 = vmatprep.subr.bf16.mxu0 0
    %778 = vmatpush1.bf16.xpose.msra.mxu0 0
    %779 = vmatprep.subr.bf16.mxu0 0
    %780 = vmatpush1.bf16.xpose.msra.mxu0 0
    %781 = vmatprep.subr.bf16.mxu0 0
    %782 = vmatpush1.bf16.xpose.msra.mxu0 0
    %783 = vmatprep.subr.bf16.mxu0 0
    %784 = vmatpush1.bf16.xpose.msra.mxu0 0
    %785 = vmatprep.subr.bf16.mxu0 0
    %786 = vmatpush1.bf16.xpose.msra.mxu0 0
    %787 = vmatprep.subr.bf16.mxu0 0
    %788 = vmatpush1.bf16.xpose.msra.mxu0 0
    %789 = vmatprep.subr.bf16.mxu0 0
    %790 = vmatpush1.bf16.xpose.msra.mxu0 0
    %791 = vmatprep.subr.bf16.mxu0 0
    %792 = vmatpush1.bf16.xpose.msra.mxu0 0
    %793 = vmatprep.subr.bf16.mxu0 0
    %794 = vmatpush1.bf16.xpose.msra.mxu0 0
    %795 = vmatprep.subr.bf16.mxu0 0
    %796 = vmatpush1.bf16.xpose.msra.mxu0 0
    %797 = vmatprep.subr.bf16.mxu0 0
    %798 = vmatpush1.bf16.xpose.msra.mxu0 0
    %799 = vmatprep.subr.bf16.mxu0 0
    %800 = vmatpush1.bf16.xpose.msra.mxu0 0
    %801 = vmatprep.subr.bf16.mxu0 0
    %802 = vmatpush1.bf16.xpose.msra.mxu0 0
    %803 = vmatprep.mubr.bf16.mxu0 0
    %804 = vmatmul.mubr.bf16.gmra.mrb[0].mxu0 %v766
    %v805 = vpop.f32.mrb[0].mxu0
    %v806 = vadd.f32 0.0, %v805
    %v807 = vpop.f32.mrb[0].mxu0
    %v808 = vpop.f32.mrb[0].mxu0
    %v809 = vpop.f32.mrb[0].mxu0
    %810 = vdwg.mxu0
    %812 = vrot.lane.b32.xlu0 %v210, 96
    %v813 = vpop.permute.xlu0 %812
    %v815 = vsel %vm225, %v218, 0
    %v818 = vsel %vm225, %v813, 0
    %820 = vmatprep.subr.bf16.mxu0 0
    %821 = vmatpush1.bf16.xpose.msra.mxu0 %v818
    %822 = vmatprep.subr.bf16.mxu0 0
    %823 = vmatpush1.bf16.xpose.msra.mxu0 0
    %824 = vmatprep.subr.bf16.mxu0 0
    %825 = vmatpush1.bf16.xpose.msra.mxu0 0
    %826 = vmatprep.subr.bf16.mxu0 0
    %827 = vmatpush1.bf16.xpose.msra.mxu0 0
    %828 = vmatprep.subr.bf16.mxu0 0
    %829 = vmatpush1.bf16.xpose.msra.mxu0 0
    %830 = vmatprep.subr.bf16.mxu0 0
    %831 = vmatpush1.bf16.xpose.msra.mxu0 0
    %832 = vmatprep.subr.bf16.mxu0 0
    %833 = vmatpush1.bf16.xpose.msra.mxu0 0
    %834 = vmatprep.subr.bf16.mxu0 0
    %835 = vmatpush1.bf16.xpose.msra.mxu0 0
    %836 = vmatprep.subr.bf16.mxu0 0
    %837 = vmatpush1.bf16.xpose.msra.mxu0 0
    %838 = vmatprep.subr.bf16.mxu0 0
    %839 = vmatpush1.bf16.xpose.msra.mxu0 0
    %840 = vmatprep.subr.bf16.mxu0 0
    %841 = vmatpush1.bf16.xpose.msra.mxu0 0
    %842 = vmatprep.subr.bf16.mxu0 0
    %843 = vmatpush1.bf16.xpose.msra.mxu0 0
    %844 = vmatprep.subr.bf16.mxu0 0
    %845 = vmatpush1.bf16.xpose.msra.mxu0 0
    %846 = vmatprep.subr.bf16.mxu0 0
    %847 = vmatpush1.bf16.xpose.msra.mxu0 0
    %848 = vmatprep.subr.bf16.mxu0 0
    %849 = vmatpush1.bf16.xpose.msra.mxu0 0
    %850 = vmatprep.subr.bf16.mxu0 0
    %851 = vmatpush1.bf16.xpose.msra.mxu0 0
    %852 = vmatprep.mubr.bf16.mxu0 0
    %853 = vmatmul.mubr.bf16.gmra.mrb[0].mxu0 %v815
    %v854 = vpop.f32.mrb[0].mxu0
    %v855 = vadd.f32 0.0, %v854
    %v856 = vpop.f32.mrb[0].mxu0
    %v857 = vpop.f32.mrb[0].mxu0
    %v858 = vpop.f32.mrb[0].mxu0
    %859 = vdwg.mxu0
    %861 = vrot.lane.b32.xlu0 %v211, 96
    %v862 = vpop.permute.xlu0 %861
    %v864 = vsel %vm225, %v219, 0
    %v867 = vsel %vm225, %v862, 0
    %869 = vmatprep.subr.bf16.mxu0 0
    %870 = vmatpush1.bf16.xpose.msra.mxu0 %v867
    %871 = vmatprep.subr.bf16.mxu0 0
    %872 = vmatpush1.bf16.xpose.msra.mxu0 0
    %873 = vmatprep.subr.bf16.mxu0 0
    %874 = vmatpush1.bf16.xpose.msra.mxu0 0
    %875 = vmatprep.subr.bf16.mxu0 0
    %876 = vmatpush1.bf16.xpose.msra.mxu0 0
    %877 = vmatprep.subr.bf16.mxu0 0
    %878 = vmatpush1.bf16.xpose.msra.mxu0 0
    %879 = vmatprep.subr.bf16.mxu0 0
    %880 = vmatpush1.bf16.xpose.msra.mxu0 0
    %881 = vmatprep.subr.bf16.mxu0 0
    %882 = vmatpush1.bf16.xpose.msra.mxu0 0
    %883 = vmatprep.subr.bf16.mxu0 0
    %884 = vmatpush1.bf16.xpose.msra.mxu0 0
    %885 = vmatprep.subr.bf16.mxu0 0
    %886 = vmatpush1.bf16.xpose.msra.mxu0 0
    %887 = vmatprep.subr.bf16.mxu0 0
    %888 = vmatpush1.bf16.xpose.msra.mxu0 0
    %889 = vmatprep.subr.bf16.mxu0 0
    %890 = vmatpush1.bf16.xpose.msra.mxu0 0
    %891 = vmatprep.subr.bf16.mxu0 0
    %892 = vmatpush1.bf16.xpose.msra.mxu0 0
    %893 = vmatprep.subr.bf16.mxu0 0
    %894 = vmatpush1.bf16.xpose.msra.mxu0 0
    %895 = vmatprep.subr.bf16.mxu0 0
    %896 = vmatpush1.bf16.xpose.msra.mxu0 0
    %897 = vmatprep.subr.bf16.mxu0 0
    %898 = vmatpush1.bf16.xpose.msra.mxu0 0
    %899 = vmatprep.subr.bf16.mxu0 0
    %900 = vmatpush1.bf16.xpose.msra.mxu0 0
    %901 = vmatprep.mubr.bf16.mxu0 0
    %902 = vmatmul.mubr.bf16.gmra.mrb[0].mxu0 %v864
    %v903 = vpop.f32.mrb[0].mxu0
    %v904 = vadd.f32 0.0, %v903
    %v905 = vpop.f32.mrb[0].mxu0
    %v906 = vpop.f32.mrb[0].mxu0
    %v907 = vpop.f32.mrb[0].mxu0
    %908 = vdwg.mxu0
    %910 = vrot.lane.b32.xlu0 %v212, 96
    %v911 = vpop.permute.xlu0 %910
    %v913 = vsel %vm225, %v220, 0
    %v916 = vsel %vm225, %v911, 0
    %918 = vmatprep.subr.bf16.mxu0 0
    %919 = vmatpush1.bf16.xpose.msra.mxu0 %v916
    %920 = vmatprep.subr.bf16.mxu0 0
    %921 = vmatpush1.bf16.xpose.msra.mxu0 0
    %922 = vmatprep.subr.bf16.mxu0 0
    %923 = vmatpush1.bf16.xpose.msra.mxu0 0
    %924 = vmatprep.subr.bf16.mxu0 0
    %925 = vmatpush1.bf16.xpose.msra.mxu0 0
    %926 = vmatprep.subr.bf16.mxu0 0
    %927 = vmatpush1.bf16.xpose.msra.mxu0 0
    %928 = vmatprep.subr.bf16.mxu0 0
    %929 = vmatpush1.bf16.xpose.msra.mxu0 0
    %930 = vmatprep.subr.bf16.mxu0 0
    %931 = vmatpush1.bf16.xpose.msra.mxu0 0
    %932 = vmatprep.subr.bf16.mxu0 0
    %933 = vmatpush1.bf16.xpose.msra.mxu0 0
    %934 = vmatprep.subr.bf16.mxu0 0
    %935 = vmatpush1.bf16.xpose.msra.mxu0 0
    %936 = vmatprep.subr.bf16.mxu0 0
    %937 = vmatpush1.bf16.xpose.msra.mxu0 0
    %938 = vmatprep.subr.bf16.mxu0 0
    %939 = vmatpush1.bf16.xpose.msra.mxu0 0
    %940 = vmatprep.subr.bf16.mxu0 0
    %941 = vmatpush1.bf16.xpose.msra.mxu0 0
    %942 = vmatprep.subr.bf16.mxu0 0
    %943 = vmatpush1.bf16.xpose.msra.mxu0 0
    %944 = vmatprep.subr.bf16.mxu0 0
    %945 = vmatpush1.bf16.xpose.msra.mxu0 0
    %946 = vmatprep.subr.bf16.mxu0 0
    %947 = vmatpush1.bf16.xpose.msra.mxu0 0
    %948 = vmatprep.subr.bf16.mxu0 0
    %949 = vmatpush1.bf16.xpose.msra.mxu0 0
    %950 = vmatprep.mubr.bf16.mxu0 0
    %951 = vmatmul.mubr.bf16.gmra.mrb[0].mxu0 %v913
    %v952 = vpop.f32.mrb[0].mxu0
    %v953 = vadd.f32 0.0, %v952
    %v954 = vpop.f32.mrb[0].mxu0
    %v955 = vpop.f32.mrb[0].mxu0
    %v956 = vpop.f32.mrb[0].mxu0
    %957 = vdwg.mxu0
    %959 = vrot.lane.b32.xlu0 %v213, 96
    %v960 = vpop.permute.xlu0 %959
    %v962 = vsel %vm225, %v221, 0
    %v965 = vsel %vm225, %v960, 0
    %967 = vmatprep.subr.bf16.mxu0 0
    %968 = vmatpush1.bf16.xpose.msra.mxu0 %v965
    %969 = vmatprep.subr.bf16.mxu0 0
    %970 = vmatpush1.bf16.xpose.msra.mxu0 0
    %971 = vmatprep.subr.bf16.mxu0 0
    %972 = vmatpush1.bf16.xpose.msra.mxu0 0
    %973 = vmatprep.subr.bf16.mxu0 0
    %974 = vmatpush1.bf16.xpose.msra.mxu0 0
    %975 = vmatprep.subr.bf16.mxu0 0
    %976 = vmatpush1.bf16.xpose.msra.mxu0 0
    %977 = vmatprep.subr.bf16.mxu0 0
    %978 = vmatpush1.bf16.xpose.msra.mxu0 0
    %979 = vmatprep.subr.bf16.mxu0 0
    %980 = vmatpush1.bf16.xpose.msra.mxu0 0
    %981 = vmatprep.subr.bf16.mxu0 0
    %982 = vmatpush1.bf16.xpose.msra.mxu0 0
    %983 = vmatprep.subr.bf16.mxu0 0
    %984 = vmatpush1.bf16.xpose.msra.mxu0 0
    %985 = vmatprep.subr.bf16.mxu0 0
    %986 = vmatpush1.bf16.xpose.msra.mxu0 0
    %987 = vmatprep.subr.bf16.mxu0 0
    %988 = vmatpush1.bf16.xpose.msra.mxu0 0
    %989 = vmatprep.subr.bf16.mxu0 0
    %990 = vmatpush1.bf16.xpose.msra.mxu0 0
    %991 = vmatprep.subr.bf16.mxu0 0
    %992 = vmatpush1.bf16.xpose.msra.mxu0 0
    %993 = vmatprep.subr.bf16.mxu0 0
    %994 = vmatpush1.bf16.xpose.msra.mxu0 0
    %995 = vmatprep.subr.bf16.mxu0 0
    %996 = vmatpush1.bf16.xpose.msra.mxu0 0
    %997 = vmatprep.subr.bf16.mxu0 0
    %998 = vmatpush1.bf16.xpose.msra.mxu0 0
    %999 = vmatprep.mubr.bf16.mxu0 0
    %1000 = vmatmul.mubr.bf16.gmra.mrb[0].mxu0 %v962
    %v1001 = vpop.f32.mrb[0].mxu0
    %v1002 = vadd.f32 0.0, %v1001
    %v1003 = vpop.f32.mrb[0].mxu0
    %v1004 = vpop.f32.mrb[0].mxu0
    %v1005 = vpop.f32.mrb[0].mxu0
    %1006 = vdwg.mxu0
    %v1007 = vsel %vm225, %v267, -inf
    %1008 = vmax.xlane.f32.xlu0 %v1007
    %v1009 = vpop.xlane.xlu0 %1008
    %v1010 = vsel %vm225, %v316, -inf
    %1011 = vmax.xlane.f32.xlu0 %v1010
    %v1012 = vpop.xlane.xlu0 %1011
    %v1013 = vsel %vm225, %v365, -inf
    %1014 = vmax.xlane.f32.xlu0 %v1013
    %v1015 = vpop.xlane.xlu0 %1014
    %v1016 = vsel %vm225, %v414, -inf
    %1017 = vmax.xlane.f32.xlu0 %v1016
    %v1018 = vpop.xlane.xlu0 %1017
    %v1019 = vsel %vm225, %v463, -inf
    %1020 = vmax.xlane.f32.xlu0 %v1019
    %v1021 = vpop.xlane.xlu0 %1020
    %v1022 = vsel %vm225, %v512, -inf
    %1023 = vmax.xlane.f32.xlu0 %v1022
    %v1024 = vpop.xlane.xlu0 %1023
    %v1025 = vsel %vm225, %v561, -inf
    %1026 = vmax.xlane.f32.xlu0 %v1025
    %v1027 = vpop.xlane.xlu0 %1026
    %v1028 = vsel %vm225, %v610, -inf
    %1029 = vmax.xlane.f32.xlu0 %v1028
    %v1030 = vpop.xlane.xlu0 %1029
    %v1031 = vsel %vm225, %v659, -inf
    %1032 = vmax.xlane.f32.xlu0 %v1031
    %v1033 = vpop.xlane.xlu0 %1032
    %v1034 = vsel %vm225, %v708, -inf
    %1035 = vmax.xlane.f32.xlu0 %v1034
    %v1036 = vpop.xlane.xlu0 %1035
    %v1037 = vsel %vm225, %v757, -inf
    %1038 = vmax.xlane.f32.xlu0 %v1037
    %v1039 = vpop.xlane.xlu0 %1038
    %v1040 = vsel %vm225, %v806, -inf
    %1041 = vmax.xlane.f32.xlu0 %v1040
    %v1042 = vpop.xlane.xlu0 %1041
    %v1043 = vsel %vm225, %v855, -inf
    %1044 = vmax.xlane.f32.xlu0 %v1043
    %v1045 = vpop.xlane.xlu0 %1044
    %v1046 = vsel %vm225, %v904, -inf
    %1047 = vmax.xlane.f32.xlu0 %v1046
    %v1048 = vpop.xlane.xlu0 %1047
    %v1049 = vsel %vm225, %v953, -inf
    %1050 = vmax.xlane.f32.xlu0 %v1049
    %v1051 = vpop.xlane.xlu0 %1050
    %v1052 = vsel %vm225, %v1002, -inf
    %1053 = vmax.xlane.f32.xlu0 %v1052
    %v1054 = vpop.xlane.xlu0 %1053
    %v1055 = vsub.f32 %v267, %v1009
    %v1056 = vsub.f32 %v316, %v1012
    %v1057 = vsub.f32 %v365, %v1015
    %v1058 = vsub.f32 %v414, %v1018
    %v1059 = vsub.f32 %v463, %v1021
    %v1060 = vsub.f32 %v512, %v1024
    %v1061 = vsub.f32 %v561, %v1027
    %v1062 = vsub.f32 %v610, %v1030
    %v1063 = vsub.f32 %v659, %v1033
    %v1064 = vsub.f32 %v708, %v1036
    %v1065 = vsub.f32 %v757, %v1039
    %v1066 = vsub.f32 %v806, %v1042
    %v1067 = vsub.f32 %v855, %v1045
    %v1068 = vsub.f32 %v904, %v1048
    %v1069 = vsub.f32 %v953, %v1051
    %v1070 = vsub.f32 %v1002, %v1054
    %v1071 = vmul.f32 %v1055, 1.442695
    %v1072 = vpow.pop %v1071
    %v1073 = vmul.f32 %v1056, 1.442695
    %v1074 = vpow.pop %v1073
    %v1075 = vmul.f32 %v1057, 1.442695
    %v1076 = vpow.pop %v1075
    %v1077 = vmul.f32 %v1058, 1.442695
    %v1078 = vpow.pop %v1077
    %v1079 = vmul.f32 %v1059, 1.442695
    %v1080 = vpow.pop %v1079
    %v1081 = vmul.f32 %v1060, 1.442695
    %v1082 = vpow.pop %v1081
    %v1083 = vmul.f32 %v1061, 1.442695
    %v1084 = vpow.pop %v1083
    %v1085 = vmul.f32 %v1062, 1.442695
    %v1086 = vpow.pop %v1085
    %v1087 = vmul.f32 %v1063, 1.442695
    %v1088 = vpow.pop %v1087
    %v1089 = vmul.f32 %v1064, 1.442695
    %v1090 = vpow.pop %v1089
    %v1091 = vmul.f32 %v1065, 1.442695
    %v1092 = vpow.pop %v1091
    %v1093 = vmul.f32 %v1066, 1.442695
    %v1094 = vpow.pop %v1093
    %v1095 = vmul.f32 %v1067, 1.442695
    %v1096 = vpow.pop %v1095
    %v1097 = vmul.f32 %v1068, 1.442695
    %v1098 = vpow.pop %v1097
    %v1099 = vmul.f32 %v1069, 1.442695
    %v1100 = vpow.pop %v1099
    %v1101 = vmul.f32 %v1070, 1.442695
    %v1102 = vpow.pop %v1101
    %v1103 = vsel %vm225, %v1072, 0.0
    %1104 = vadd.xlane.f32.xlu0 %v1103
    %v1105 = vpop.xlane.xlu0 %1104
    %v1106 = vsel %vm225, %v1074, 0.0
    %1107 = vadd.xlane.f32.xlu0 %v1106
    %v1108 = vpop.xlane.xlu0 %1107
    %v1109 = vsel %vm225, %v1076, 0.0
    %1110 = vadd.xlane.f32.xlu0 %v1109
    %v1111 = vpop.xlane.xlu0 %1110
    %v1112 = vsel %vm225, %v1078, 0.0
    %1113 = vadd.xlane.f32.xlu0 %v1112
    %v1114 = vpop.xlane.xlu0 %1113
    %v1115 = vsel %vm225, %v1080, 0.0
    %1116 = vadd.xlane.f32.xlu0 %v1115
    %v1117 = vpop.xlane.xlu0 %1116
    %v1118 = vsel %vm225, %v1082, 0.0
    %1119 = vadd.xlane.f32.xlu0 %v1118
    %v1120 = vpop.xlane.xlu0 %1119
    %v1121 = vsel %vm225, %v1084, 0.0
    %1122 = vadd.xlane.f32.xlu0 %v1121
    %v1123 = vpop.xlane.xlu0 %1122
    %v1124 = vsel %vm225, %v1086, 0.0
    %1125 = vadd.xlane.f32.xlu0 %v1124
    %v1126 = vpop.xlane.xlu0 %1125
    %v1127 = vsel %vm225, %v1088, 0.0
    %1128 = vadd.xlane.f32.xlu0 %v1127
    %v1129 = vpop.xlane.xlu0 %1128
    %v1130 = vsel %vm225, %v1090, 0.0
    %1131 = vadd.xlane.f32.xlu0 %v1130
    %v1132 = vpop.xlane.xlu0 %1131
    %v1133 = vsel %vm225, %v1092, 0.0
    %1134 = vadd.xlane.f32.xlu0 %v1133
    %v1135 = vpop.xlane.xlu0 %1134
    %v1136 = vsel %vm225, %v1094, 0.0
    %1137 = vadd.xlane.f32.xlu0 %v1136
    %v1138 = vpop.xlane.xlu0 %1137
    %v1139 = vsel %vm225, %v1096, 0.0
    %1140 = vadd.xlane.f32.xlu0 %v1139
    %v1141 = vpop.xlane.xlu0 %1140
    %v1142 = vsel %vm225, %v1098, 0.0
    %1143 = vadd.xlane.f32.xlu0 %v1142
    %v1144 = vpop.xlane.xlu0 %1143
    %v1145 = vsel %vm225, %v1100, 0.0
    %1146 = vadd.xlane.f32.xlu0 %v1145
    %v1147 = vpop.xlane.xlu0 %1146
    %v1148 = vsel %vm225, %v1102, 0.0
    %1149 = vadd.xlane.f32.xlu0 %v1148
    %v1150 = vpop.xlane.xlu0 %1149
    %v1151 = vpack.c.bf16 %v1072, %v1072
    %v1152 = vpack.c.bf16 %v1074, %v1074
    %v1153 = vpack.c.bf16 %v1076, %v1076
    %v1154 = vpack.c.bf16 %v1078, %v1078
    %v1155 = vpack.c.bf16 %v1080, %v1080
    %v1156 = vpack.c.bf16 %v1082, %v1082
    %v1157 = vpack.c.bf16 %v1084, %v1084
    %v1158 = vpack.c.bf16 %v1086, %v1086
    %v1159 = vpack.c.bf16 %v1088, %v1088
    %v1160 = vpack.c.bf16 %v1090, %v1090
    %v1161 = vpack.c.bf16 %v1092, %v1092
    %v1162 = vpack.c.bf16 %v1094, %v1094
    %v1163 = vpack.c.bf16 %v1096, %v1096
    %v1164 = vpack.c.bf16 %v1098, %v1098
    %v1165 = vpack.c.bf16 %v1100, %v1100
    %v1166 = vpack.c.bf16 %v1102, %v1102
    %1167 = vrot.lane.b32.xlu0 %v214, 64
    %v1168 = vpop.permute.xlu0 %1167
    %v1170 = vsel %vm225, %v1151, 0
    %vm1172 = vcmask 1043456
    %v1174 = vsel %vm1172, %v1168, 0
    %1176 = vmatprep.subr.bf16.mxu0 0
    %1177 = vmatpush1.bf16.msra.mxu0 %v1174
    %1178 = vmatprep.subr.bf16.mxu0 0
    %1179 = vmatpush1.bf16.msra.mxu0 0
    %1180 = vmatprep.subr.bf16.mxu0 0
    %1181 = vmatpush1.bf16.msra.mxu0 0
    %1182 = vmatprep.subr.bf16.mxu0 0
    %1183 = vmatpush1.bf16.msra.mxu0 0
    %1184 = vmatprep.subr.bf16.mxu0 0
    %1185 = vmatpush1.bf16.msra.mxu0 0
    %1186 = vmatprep.subr.bf16.mxu0 0
    %1187 = vmatpush1.bf16.msra.mxu0 0
    %1188 = vmatprep.subr.bf16.mxu0 0
    %1189 = vmatpush1.bf16.msra.mxu0 0
    %1190 = vmatprep.subr.bf16.mxu0 0
    %1191 = vmatpush1.bf16.msra.mxu0 0
    %1192 = vmatprep.subr.bf16.mxu0 0
    %1193 = vmatpush1.bf16.msra.mxu0 0
    %1194 = vmatprep.subr.bf16.mxu0 0
    %1195 = vmatpush1.bf16.msra.mxu0 0
    %1196 = vmatprep.subr.bf16.mxu0 0
    %1197 = vmatpush1.bf16.msra.mxu0 0
    %1198 = vmatprep.subr.bf16.mxu0 0
    %1199 = vmatpush1.bf16.msra.mxu0 0
    %1200 = vmatprep.subr.bf16.mxu0 0
    %1201 = vmatpush1.bf16.msra.mxu0 0
    %1202 = vmatprep.subr.bf16.mxu0 0
    %1203 = vmatpush1.bf16.msra.mxu0 0
    %1204 = vmatprep.subr.bf16.mxu0 0
    %1205 = vmatpush1.bf16.msra.mxu0 0
    %1206 = vmatprep.subr.bf16.mxu0 0
    %1207 = vmatpush1.bf16.msra.mxu0 0
    %1208 = vmatprep.mubr.bf16.mxu0 0
    %1209 = vmatmul.mubr.bf16.gmra.mrb[0].mxu0 %v1170
    %v1210 = vpop.f32.mrb[0].mxu0
    %v1211 = vadd.f32 0.0, %v1210
    %v1212 = vpop.f32.mrb[0].mxu0
    %v1213 = vpop.f32.mrb[0].mxu0
    %v1214 = vpop.f32.mrb[0].mxu0
    %1215 = vdwg.mxu0
    %1216 = vrot.lane.b32.xlu0 %v215, 64
    %v1217 = vpop.permute.xlu0 %1216
    %v1219 = vsel %vm225, %v1152, 0
    %v1222 = vsel %vm1172, %v1217, 0
    %1224 = vmatprep.subr.bf16.mxu0 0
    %1225 = vmatpush1.bf16.msra.mxu0 %v1222
    %1226 = vmatprep.subr.bf16.mxu0 0
    %1227 = vmatpush1.bf16.msra.mxu0 0
    %1228 = vmatprep.subr.bf16.mxu0 0
    %1229 = vmatpush1.bf16.msra.mxu0 0
    %1230 = vmatprep.subr.bf16.mxu0 0
    %1231 = vmatpush1.bf16.msra.mxu0 0
    %1232 = vmatprep.subr.bf16.mxu0 0
    %1233 = vmatpush1.bf16.msra.mxu0 0
    %1234 = vmatprep.subr.bf16.mxu0 0
    %1235 = vmatpush1.bf16.msra.mxu0 0
    %1236 = vmatprep.subr.bf16.mxu0 0
    %1237 = vmatpush1.bf16.msra.mxu0 0
    %1238 = vmatprep.subr.bf16.mxu0 0
    %1239 = vmatpush1.bf16.msra.mxu0 0
    %1240 = vmatprep.subr.bf16.mxu0 0
    %1241 = vmatpush1.bf16.msra.mxu0 0
    %1242 = vmatprep.subr.bf16.mxu0 0
    %1243 = vmatpush1.bf16.msra.mxu0 0
    %1244 = vmatprep.subr.bf16.mxu0 0
    %1245 = vmatpush1.bf16.msra.mxu0 0
    %1246 = vmatprep.subr.bf16.mxu0 0
    %1247 = vmatpush1.bf16.msra.mxu0 0
    %1248 = vmatprep.subr.bf16.mxu0 0
    %1249 = vmatpush1.bf16.msra.mxu0 0
    %1250 = vmatprep.subr.bf16.mxu0 0
    %1251 = vmatpush1.bf16.msra.mxu0 0
    %1252 = vmatprep.subr.bf16.mxu0 0
    %1253 = vmatpush1.bf16.msra.mxu0 0
    %1254 = vmatprep.subr.bf16.mxu0 0
    %1255 = vmatpush1.bf16.msra.mxu0 0
    %1256 = vmatprep.mubr.bf16.mxu0 0
    %1257 = vmatmul.mubr.bf16.gmra.mrb[0].mxu0 %v1219
    %v1258 = vpop.f32.mrb[0].mxu0
    %v1259 = vadd.f32 0.0, %v1258
    %v1260 = vpop.f32.mrb[0].mxu0
    %v1261 = vpop.f32.mrb[0].mxu0
    %v1262 = vpop.f32.mrb[0].mxu0
    %1263 = vdwg.mxu0
    %1264 = vrot.lane.b32.xlu0 %v216, 64
    %v1265 = vpop.permute.xlu0 %1264
    %v1267 = vsel %vm225, %v1153, 0
    %v1270 = vsel %vm1172, %v1265, 0
    %1272 = vmatprep.subr.bf16.mxu0 0
    %1273 = vmatpush1.bf16.msra.mxu0 %v1270
    %1274 = vmatprep.subr.bf16.mxu0 0
    %1275 = vmatpush1.bf16.msra.mxu0 0
    %1276 = vmatprep.subr.bf16.mxu0 0
    %1277 = vmatpush1.bf16.msra.mxu0 0
    %1278 = vmatprep.subr.bf16.mxu0 0
    %1279 = vmatpush1.bf16.msra.mxu0 0
    %1280 = vmatprep.subr.bf16.mxu0 0
    %1281 = vmatpush1.bf16.msra.mxu0 0
    %1282 = vmatprep.subr.bf16.mxu0 0
    %1283 = vmatpush1.bf16.msra.mxu0 0
    %1284 = vmatprep.subr.bf16.mxu0 0
    %1285 = vmatpush1.bf16.msra.mxu0 0
    %1286 = vmatprep.subr.bf16.mxu0 0
    %1287 = vmatpush1.bf16.msra.mxu0 0
    %1288 = vmatprep.subr.bf16.mxu0 0
    %1289 = vmatpush1.bf16.msra.mxu0 0
    %1290 = vmatprep.subr.bf16.mxu0 0
    %1291 = vmatpush1.bf16.msra.mxu0 0
    %1292 = vmatprep.subr.bf16.mxu0 0
    %1293 = vmatpush1.bf16.msra.mxu0 0
    %1294 = vmatprep.subr.bf16.mxu0 0
    %1295 = vmatpush1.bf16.msra.mxu0 0
    %1296 = vmatprep.subr.bf16.mxu0 0
    %1297 = vmatpush1.bf16.msra.mxu0 0
    %1298 = vmatprep.subr.bf16.mxu0 0
    %1299 = vmatpush1.bf16.msra.mxu0 0
    %1300 = vmatprep.subr.bf16.mxu0 0
    %1301 = vmatpush1.bf16.msra.mxu0 0
    %1302 = vmatprep.subr.bf16.mxu0 0
    %1303 = vmatpush1.bf16.msra.mxu0 0
    %1304 = vmatprep.mubr.bf16.mxu0 0
    %1305 = vmatmul.mubr.bf16.gmra.mrb[0].mxu0 %v1267
    %v1306 = vpop.f32.mrb[0].mxu0
    %v1307 = vadd.f32 0.0, %v1306
    %v1308 = vpop.f32.mrb[0].mxu0
    %v1309 = vpop.f32.mrb[0].mxu0
    %v1310 = vpop.f32.mrb[0].mxu0
    %1311 = vdwg.mxu0
    %1312 = vrot.lane.b32.xlu0 %v217, 64
    %v1313 = vpop.permute.xlu0 %1312
    %v1315 = vsel %vm225, %v1154, 0
    %v1318 = vsel %vm1172, %v1313, 0
    %1320 = vmatprep.subr.bf16.mxu0 0
    %1321 = vmatpush1.bf16.msra.mxu0 %v1318
    %1322 = vmatprep.subr.bf16.mxu0 0
    %1323 = vmatpush1.bf16.msra.mxu0 0
    %1324 = vmatprep.subr.bf16.mxu0 0
    %1325 = vmatpush1.bf16.msra.mxu0 0
    %1326 = vmatprep.subr.bf16.mxu0 0
    %1327 = vmatpush1.bf16.msra.mxu0 0
    %1328 = vmatprep.subr.bf16.mxu0 0
    %1329 = vmatpush1.bf16.msra.mxu0 0
    %1330 = vmatprep.subr.bf16.mxu0 0
    %1331 = vmatpush1.bf16.msra.mxu0 0
    %1332 = vmatprep.subr.bf16.mxu0 0
    %1333 = vmatpush1.bf16.msra.mxu0 0
    %1334 = vmatprep.subr.bf16.mxu0 0
    %1335 = vmatpush1.bf16.msra.mxu0 0
    %1336 = vmatprep.subr.bf16.mxu0 0
    %1337 = vmatpush1.bf16.msra.mxu0 0
    %1338 = vmatprep.subr.bf16.mxu0 0
    %1339 = vmatpush1.bf16.msra.mxu0 0
    %1340 = vmatprep.subr.bf16.mxu0 0
    %1341 = vmatpush1.bf16.msra.mxu0 0
    %1342 = vmatprep.subr.bf16.mxu0 0
    %1343 = vmatpush1.bf16.msra.mxu0 0
    %1344 = vmatprep.subr.bf16.mxu0 0
    %1345 = vmatpush1.bf16.msra.mxu0 0
    %1346 = vmatprep.subr.bf16.mxu0 0
    %1347 = vmatpush1.bf16.msra.mxu0 0
    %1348 = vmatprep.subr.bf16.mxu0 0
    %1349 = vmatpush1.bf16.msra.mxu0 0
    %1350 = vmatprep.subr.bf16.mxu0 0
    %1351 = vmatpush1.bf16.msra.mxu0 0
    %1352 = vmatprep.mubr.bf16.mxu0 0
    %1353 = vmatmul.mubr.bf16.gmra.mrb[0].mxu0 %v1315
    %v1354 = vpop.f32.mrb[0].mxu0
    %v1355 = vadd.f32 0.0, %v1354
    %v1356 = vpop.f32.mrb[0].mxu0
    %v1357 = vpop.f32.mrb[0].mxu0
    %v1358 = vpop.f32.mrb[0].mxu0
    %1359 = vdwg.mxu0
    %1360 = vrot.lane.b32.xlu0 %v218, 64
    %v1361 = vpop.permute.xlu0 %1360
    %v1363 = vsel %vm225, %v1155, 0
    %v1366 = vsel %vm1172, %v1361, 0
    %1368 = vmatprep.subr.bf16.mxu0 0
    %1369 = vmatpush1.bf16.msra.mxu0 %v1366
    %1370 = vmatprep.subr.bf16.mxu0 0
    %1371 = vmatpush1.bf16.msra.mxu0 0
    %1372 = vmatprep.subr.bf16.mxu0 0
    %1373 = vmatpush1.bf16.msra.mxu0 0
    %1374 = vmatprep.subr.bf16.mxu0 0
    %1375 = vmatpush1.bf16.msra.mxu0 0
    %1376 = vmatprep.subr.bf16.mxu0 0
    %1377 = vmatpush1.bf16.msra.mxu0 0
    %1378 = vmatprep.subr.bf16.mxu0 0
    %1379 = vmatpush1.bf16.msra.mxu0 0
    %1380 = vmatprep.subr.bf16.mxu0 0
    %1381 = vmatpush1.bf16.msra.mxu0 0
    %1382 = vmatprep.subr.bf16.mxu0 0
    %1383 = vmatpush1.bf16.msra.mxu0 0
    %1384 = vmatprep.subr.bf16.mxu0 0
    %1385 = vmatpush1.bf16.msra.mxu0 0
    %1386 = vmatprep.subr.bf16.mxu0 0
    %1387 = vmatpush1.bf16.msra.mxu0 0
    %1388 = vmatprep.subr.bf16.mxu0 0
    %1389 = vmatpush1.bf16.msra.mxu0 0
    %1390 = vmatprep.subr.bf16.mxu0 0
    %1391 = vmatpush1.bf16.msra.mxu0 0
    %1392 = vmatprep.subr.bf16.mxu0 0
    %1393 = vmatpush1.bf16.msra.mxu0 0
    %1394 = vmatprep.subr.bf16.mxu0 0
    %1395 = vmatpush1.bf16.msra.mxu0 0
    %1396 = vmatprep.subr.bf16.mxu0 0
    %1397 = vmatpush1.bf16.msra.mxu0 0
    %1398 = vmatprep.subr.bf16.mxu0 0
    %1399 = vmatpush1.bf16.msra.mxu0 0
    %1400 = vmatprep.mubr.bf16.mxu0 0
    %1401 = vmatmul.mubr.bf16.gmra.mrb[0].mxu0 %v1363
    %v1402 = vpop.f32.mrb[0].mxu0
    %v1403 = vadd.f32 0.0, %v1402
    %v1404 = vpop.f32.mrb[0].mxu0
    %v1405 = vpop.f32.mrb[0].mxu0
    %v1406 = vpop.f32.mrb[0].mxu0
    %1407 = vdwg.mxu0
    %1408 = vrot.lane.b32.xlu0 %v219, 64
    %v1409 = vpop.permute.xlu0 %1408
    %v1411 = vsel %vm225, %v1156, 0
    %v1414 = vsel %vm1172, %v1409, 0
    %1416 = vmatprep.subr.bf16.mxu0 0
    %1417 = vmatpush1.bf16.msra.mxu0 %v1414
    %1418 = vmatprep.subr.bf16.mxu0 0
    %1419 = vmatpush1.bf16.msra.mxu0 0
    %1420 = vmatprep.subr.bf16.mxu0 0
    %1421 = vmatpush1.bf16.msra.mxu0 0
    %1422 = vmatprep.subr.bf16.mxu0 0
    %1423 = vmatpush1.bf16.msra.mxu0 0
    %1424 = vmatprep.subr.bf16.mxu0 0
    %1425 = vmatpush1.bf16.msra.mxu0 0
    %1426 = vmatprep.subr.bf16.mxu0 0
    %1427 = vmatpush1.bf16.msra.mxu0 0
    %1428 = vmatprep.subr.bf16.mxu0 0
    %1429 = vmatpush1.bf16.msra.mxu0 0
    %1430 = vmatprep.subr.bf16.mxu0 0
    %1431 = vmatpush1.bf16.msra.mxu0 0
    %1432 = vmatprep.subr.bf16.mxu0 0
    %1433 = vmatpush1.bf16.msra.mxu0 0
    %1434 = vmatprep.subr.bf16.mxu0 0
    %1435 = vmatpush1.bf16.msra.mxu0 0
    %1436 = vmatprep.subr.bf16.mxu0 0
    %1437 = vmatpush1.bf16.msra.mxu0 0
    %1438 = vmatprep.subr.bf16.mxu0 0
    %1439 = vmatpush1.bf16.msra.mxu0 0
    %1440 = vmatprep.subr.bf16.mxu0 0
    %1441 = vmatpush1.bf16.msra.mxu0 0
    %1442 = vmatprep.subr.bf16.mxu0 0
    %1443 = vmatpush1.bf16.msra.mxu0 0
    %1444 = vmatprep.subr.bf16.mxu0 0
    %1445 = vmatpush1.bf16.msra.mxu0 0
    %1446 = vmatprep.subr.bf16.mxu0 0
    %1447 = vmatpush1.bf16.msra.mxu0 0
    %1448 = vmatprep.mubr.bf16.mxu0 0
    %1449 = vmatmul.mubr.bf16.gmra.mrb[0].mxu0 %v1411
    %v1450 = vpop.f32.mrb[0].mxu0
    %v1451 = vadd.f32 0.0, %v1450
    %v1452 = vpop.f32.mrb[0].mxu0
    %v1453 = vpop.f32.mrb[0].mxu0
    %v1454 = vpop.f32.mrb[0].mxu0
    %1455 = vdwg.mxu0
    %1456 = vrot.lane.b32.xlu0 %v220, 64
    %v1457 = vpop.permute.xlu0 %1456
    %v1459 = vsel %vm225, %v1157, 0
    %v1462 = vsel %vm1172, %v1457, 0
    %1464 = vmatprep.subr.bf16.mxu0 0
    %1465 = vmatpush1.bf16.msra.mxu0 %v1462
    %1466 = vmatprep.subr.bf16.mxu0 0
    %1467 = vmatpush1.bf16.msra.mxu0 0
    %1468 = vmatprep.subr.bf16.mxu0 0
    %1469 = vmatpush1.bf16.msra.mxu0 0
    %1470 = vmatprep.subr.bf16.mxu0 0
    %1471 = vmatpush1.bf16.msra.mxu0 0
    %1472 = vmatprep.subr.bf16.mxu0 0
    %1473 = vmatpush1.bf16.msra.mxu0 0
    %1474 = vmatprep.subr.bf16.mxu0 0
    %1475 = vmatpush1.bf16.msra.mxu0 0
    %1476 = vmatprep.subr.bf16.mxu0 0
    %1477 = vmatpush1.bf16.msra.mxu0 0
    %1478 = vmatprep.subr.bf16.mxu0 0
    %1479 = vmatpush1.bf16.msra.mxu0 0
    %1480 = vmatprep.subr.bf16.mxu0 0
    %1481 = vmatpush1.bf16.msra.mxu0 0
    %1482 = vmatprep.subr.bf16.mxu0 0
    %1483 = vmatpush1.bf16.msra.mxu0 0
    %1484 = vmatprep.subr.bf16.mxu0 0
    %1485 = vmatpush1.bf16.msra.mxu0 0
    %1486 = vmatprep.subr.bf16.mxu0 0
    %1487 = vmatpush1.bf16.msra.mxu0 0
    %1488 = vmatprep.subr.bf16.mxu0 0
    %1489 = vmatpush1.bf16.msra.mxu0 0
    %1490 = vmatprep.subr.bf16.mxu0 0
    %1491 = vmatpush1.bf16.msra.mxu0 0
    %1492 = vmatprep.subr.bf16.mxu0 0
    %1493 = vmatpush1.bf16.msra.mxu0 0
    %1494 = vmatprep.subr.bf16.mxu0 0
    %1495 = vmatpush1.bf16.msra.mxu0 0
    %1496 = vmatprep.mubr.bf16.mxu0 0
    %1497 = vmatmul.mubr.bf16.gmra.mrb[0].mxu0 %v1459
    %v1498 = vpop.f32.mrb[0].mxu0
    %v1499 = vadd.f32 0.0, %v1498
    %v1500 = vpop.f32.mrb[0].mxu0
    %v1501 = vpop.f32.mrb[0].mxu0
    %v1502 = vpop.f32.mrb[0].mxu0
    %1503 = vdwg.mxu0
    %1504 = vrot.lane.b32.xlu0 %v221, 64
    %v1505 = vpop.permute.xlu0 %1504
    %v1507 = vsel %vm225, %v1158, 0
    %v1510 = vsel %vm1172, %v1505, 0
    %1512 = vmatprep.subr.bf16.mxu0 0
    %1513 = vmatpush1.bf16.msra.mxu0 %v1510
    %1514 = vmatprep.subr.bf16.mxu0 0
    %1515 = vmatpush1.bf16.msra.mxu0 0
    %1516 = vmatprep.subr.bf16.mxu0 0
    %1517 = vmatpush1.bf16.msra.mxu0 0
    %1518 = vmatprep.subr.bf16.mxu0 0
    %1519 = vmatpush1.bf16.msra.mxu0 0
    %1520 = vmatprep.subr.bf16.mxu0 0
    %1521 = vmatpush1.bf16.msra.mxu0 0
    %1522 = vmatprep.subr.bf16.mxu0 0
    %1523 = vmatpush1.bf16.msra.mxu0 0
    %1524 = vmatprep.subr.bf16.mxu0 0
    %1525 = vmatpush1.bf16.msra.mxu0 0
    %1526 = vmatprep.subr.bf16.mxu0 0
    %1527 = vmatpush1.bf16.msra.mxu0 0
    %1528 = vmatprep.subr.bf16.mxu0 0
    %1529 = vmatpush1.bf16.msra.mxu0 0
    %1530 = vmatprep.subr.bf16.mxu0 0
    %1531 = vmatpush1.bf16.msra.mxu0 0
    %1532 = vmatprep.subr.bf16.mxu0 0
    %1533 = vmatpush1.bf16.msra.mxu0 0
    %1534 = vmatprep.subr.bf16.mxu0 0
    %1535 = vmatpush1.bf16.msra.mxu0 0
    %1536 = vmatprep.subr.bf16.mxu0 0
    %1537 = vmatpush1.bf16.msra.mxu0 0
    %1538 = vmatprep.subr.bf16.mxu0 0
    %1539 = vmatpush1.bf16.msra.mxu0 0
    %1540 = vmatprep.subr.bf16.mxu0 0
    %1541 = vmatpush1.bf16.msra.mxu0 0
    %1542 = vmatprep.subr.bf16.mxu0 0
    %1543 = vmatpush1.bf16.msra.mxu0 0
    %1544 = vmatprep.mubr.bf16.mxu0 0
    %1545 = vmatmul.mubr.bf16.gmra.mrb[0].mxu0 %v1507
    %v1546 = vpop.f32.mrb[0].mxu0
    %v1547 = vadd.f32 0.0, %v1546
    %v1548 = vpop.f32.mrb[0].mxu0
    %v1549 = vpop.f32.mrb[0].mxu0
    %v1550 = vpop.f32.mrb[0].mxu0
    %1551 = vdwg.mxu0
    %1552 = vrot.lane.b32.xlu0 %v206, 64
    %v1553 = vpop.permute.xlu0 %1552
    %v1555 = vsel %vm225, %v1159, 0
    %v1558 = vsel %vm1172, %v1553, 0
    %1560 = vmatprep.subr.bf16.mxu0 0
    %1561 = vmatpush1.bf16.msra.mxu0 %v1558
    %1562 = vmatprep.subr.bf16.mxu0 0
    %1563 = vmatpush1.bf16.msra.mxu0 0
    %1564 = vmatprep.subr.bf16.mxu0 0
    %1565 = vmatpush1.bf16.msra.mxu0 0
    %1566 = vmatprep.subr.bf16.mxu0 0
    %1567 = vmatpush1.bf16.msra.mxu0 0
    %1568 = vmatprep.subr.bf16.mxu0 0
    %1569 = vmatpush1.bf16.msra.mxu0 0
    %1570 = vmatprep.subr.bf16.mxu0 0
    %1571 = vmatpush1.bf16.msra.mxu0 0
    %1572 = vmatprep.subr.bf16.mxu0 0
    %1573 = vmatpush1.bf16.msra.mxu0 0
    %1574 = vmatprep.subr.bf16.mxu0 0
    %1575 = vmatpush1.bf16.msra.mxu0 0
    %1576 = vmatprep.subr.bf16.mxu0 0
    %1577 = vmatpush1.bf16.msra.mxu0 0
    %1578 = vmatprep.subr.bf16.mxu0 0
    %1579 = vmatpush1.bf16.msra.mxu0 0
    %1580 = vmatprep.subr.bf16.mxu0 0
    %1581 = vmatpush1.bf16.msra.mxu0 0
    %1582 = vmatprep.subr.bf16.mxu0 0
    %1583 = vmatpush1.bf16.msra.mxu0 0
    %1584 = vmatprep.subr.bf16.mxu0 0
    %1585 = vmatpush1.bf16.msra.mxu0 0
    %1586 = vmatprep.subr.bf16.mxu0 0
    %1587 = vmatpush1.bf16.msra.mxu0 0
    %1588 = vmatprep.subr.bf16.mxu0 0
    %1589 = vmatpush1.bf16.msra.mxu0 0
    %1590 = vmatprep.subr.bf16.mxu0 0
    %1591 = vmatpush1.bf16.msra.mxu0 0
    %1592 = vmatprep.mubr.bf16.mxu0 0
    %1593 = vmatmul.mubr.bf16.gmra.mrb[0].mxu0 %v1555
    %v1594 = vpop.f32.mrb[0].mxu0
    %v1595 = vadd.f32 0.0, %v1594
    %v1596 = vpop.f32.mrb[0].mxu0
    %v1597 = vpop.f32.mrb[0].mxu0
    %v1598 = vpop.f32.mrb[0].mxu0
    %1599 = vdwg.mxu0
    %1600 = vrot.lane.b32.xlu0 %v207, 64
    %v1601 = vpop.permute.xlu0 %1600
    %v1603 = vsel %vm225, %v1160, 0
    %v1606 = vsel %vm1172, %v1601, 0
    %1608 = vmatprep.subr.bf16.mxu0 0
    %1609 = vmatpush1.bf16.msra.mxu0 %v1606
    %1610 = vmatprep.subr.bf16.mxu0 0
    %1611 = vmatpush1.bf16.msra.mxu0 0
    %1612 = vmatprep.subr.bf16.mxu0 0
    %1613 = vmatpush1.bf16.msra.mxu0 0
    %1614 = vmatprep.subr.bf16.mxu0 0
    %1615 = vmatpush1.bf16.msra.mxu0 0
    %1616 = vmatprep.subr.bf16.mxu0 0
    %1617 = vmatpush1.bf16.msra.mxu0 0
    %1618 = vmatprep.subr.bf16.mxu0 0
    %1619 = vmatpush1.bf16.msra.mxu0 0
    %1620 = vmatprep.subr.bf16.mxu0 0
    %1621 = vmatpush1.bf16.msra.mxu0 0
    %1622 = vmatprep.subr.bf16.mxu0 0
    %1623 = vmatpush1.bf16.msra.mxu0 0
    %1624 = vmatprep.subr.bf16.mxu0 0
    %1625 = vmatpush1.bf16.msra.mxu0 0
    %1626 = vmatprep.subr.bf16.mxu0 0
    %1627 = vmatpush1.bf16.msra.mxu0 0
    %1628 = vmatprep.subr.bf16.mxu0 0
    %1629 = vmatpush1.bf16.msra.mxu0 0
    %1630 = vmatprep.subr.bf16.mxu0 0
    %1631 = vmatpush1.bf16.msra.mxu0 0
    %1632 = vmatprep.subr.bf16.mxu0 0
    %1633 = vmatpush1.bf16.msra.mxu0 0
    %1634 = vmatprep.subr.bf16.mxu0 0
    %1635 = vmatpush1.bf16.msra.mxu0 0
    %1636 = vmatprep.subr.bf16.mxu0 0
    %1637 = vmatpush1.bf16.msra.mxu0 0
    %1638 = vmatprep.subr.bf16.mxu0 0
    %1639 = vmatpush1.bf16.msra.mxu0 0
    %1640 = vmatprep.mubr.bf16.mxu0 0
    %1641 = vmatmul.mubr.bf16.gmra.mrb[0].mxu0 %v1603
    %v1642 = vpop.f32.mrb[0].mxu0
    %v1643 = vadd.f32 0.0, %v1642
    %v1644 = vpop.f32.mrb[0].mxu0
    %v1645 = vpop.f32.mrb[0].mxu0
    %v1646 = vpop.f32.mrb[0].mxu0
    %1647 = vdwg.mxu0
    %1648 = vrot.lane.b32.xlu0 %v208, 64
    %v1649 = vpop.permute.xlu0 %1648
    %v1651 = vsel %vm225, %v1161, 0
    %v1654 = vsel %vm1172, %v1649, 0
    %1656 = vmatprep.subr.bf16.mxu0 0
    %1657 = vmatpush1.bf16.msra.mxu0 %v1654
    %1658 = vmatprep.subr.bf16.mxu0 0
    %1659 = vmatpush1.bf16.msra.mxu0 0
    %1660 = vmatprep.subr.bf16.mxu0 0
    %1661 = vmatpush1.bf16.msra.mxu0 0
    %1662 = vmatprep.subr.bf16.mxu0 0
    %1663 = vmatpush1.bf16.msra.mxu0 0
    %1664 = vmatprep.subr.bf16.mxu0 0
    %1665 = vmatpush1.bf16.msra.mxu0 0
    %1666 = vmatprep.subr.bf16.mxu0 0
    %1667 = vmatpush1.bf16.msra.mxu0 0
    %1668 = vmatprep.subr.bf16.mxu0 0
    %1669 = vmatpush1.bf16.msra.mxu0 0
    %1670 = vmatprep.subr.bf16.mxu0 0
    %1671 = vmatpush1.bf16.msra.mxu0 0
    %1672 = vmatprep.subr.bf16.mxu0 0
    %1673 = vmatpush1.bf16.msra.mxu0 0
    %1674 = vmatprep.subr.bf16.mxu0 0
    %1675 = vmatpush1.bf16.msra.mxu0 0
    %1676 = vmatprep.subr.bf16.mxu0 0
    %1677 = vmatpush1.bf16.msra.mxu0 0
    %1678 = vmatprep.subr.bf16.mxu0 0
    %1679 = vmatpush1.bf16.msra.mxu0 0
    %1680 = vmatprep.subr.bf16.mxu0 0
    %1681 = vmatpush1.bf16.msra.mxu0 0
    %1682 = vmatprep.subr.bf16.mxu0 0
    %1683 = vmatpush1.bf16.msra.mxu0 0
    %1684 = vmatprep.subr.bf16.mxu0 0
    %1685 = vmatpush1.bf16.msra.mxu0 0
    %1686 = vmatprep.subr.bf16.mxu0 0
    %1687 = vmatpush1.bf16.msra.mxu0 0
    %1688 = vmatprep.mubr.bf16.mxu0 0
    %1689 = vmatmul.mubr.bf16.gmra.mrb[0].mxu0 %v1651
    %v1690 = vpop.f32.mrb[0].mxu0
    %v1691 = vadd.f32 0.0, %v1690
    %v1692 = vpop.f32.mrb[0].mxu0
    %v1693 = vpop.f32.mrb[0].mxu0
    %v1694 = vpop.f32.mrb[0].mxu0
    %1695 = vdwg.mxu0
    %1696 = vrot.lane.b32.xlu0 %v209, 64
    %v1697 = vpop.permute.xlu0 %1696
    %v1699 = vsel %vm225, %v1162, 0
    %v1702 = vsel %vm1172, %v1697, 0
    %1704 = vmatprep.subr.bf16.mxu0 0
    %1705 = vmatpush1.bf16.msra.mxu0 %v1702
    %1706 = vmatprep.subr.bf16.mxu0 0
    %1707 = vmatpush1.bf16.msra.mxu0 0
    %1708 = vmatprep.subr.bf16.mxu0 0
    %1709 = vmatpush1.bf16.msra.mxu0 0
    %1710 = vmatprep.subr.bf16.mxu0 0
    %1711 = vmatpush1.bf16.msra.mxu0 0
    %1712 = vmatprep.subr.bf16.mxu0 0
    %1713 = vmatpush1.bf16.msra.mxu0 0
    %1714 = vmatprep.subr.bf16.mxu0 0
    %1715 = vmatpush1.bf16.msra.mxu0 0
    %1716 = vmatprep.subr.bf16.mxu0 0
    %1717 = vmatpush1.bf16.msra.mxu0 0
    %1718 = vmatprep.subr.bf16.mxu0 0
    %1719 = vmatpush1.bf16.msra.mxu0 0
    %1720 = vmatprep.subr.bf16.mxu0 0
    %1721 = vmatpush1.bf16.msra.mxu0 0
    %1722 = vmatprep.subr.bf16.mxu0 0
    %1723 = vmatpush1.bf16.msra.mxu0 0
    %1724 = vmatprep.subr.bf16.mxu0 0
    %1725 = vmatpush1.bf16.msra.mxu0 0
    %1726 = vmatprep.subr.bf16.mxu0 0
    %1727 = vmatpush1.bf16.msra.mxu0 0
    %1728 = vmatprep.subr.bf16.mxu0 0
    %1729 = vmatpush1.bf16.msra.mxu0 0
    %1730 = vmatprep.subr.bf16.mxu0 0
    %1731 = vmatpush1.bf16.msra.mxu0 0
    %1732 = vmatprep.subr.bf16.mxu0 0
    %1733 = vmatpush1.bf16.msra.mxu0 0
    %1734 = vmatprep.subr.bf16.mxu0 0
    %1735 = vmatpush1.bf16.msra.mxu0 0
    %1736 = vmatprep.mubr.bf16.mxu0 0
    %1737 = vmatmul.mubr.bf16.gmra.mrb[0].mxu0 %v1699
    %v1738 = vpop.f32.mrb[0].mxu0
    %v1739 = vadd.f32 0.0, %v1738
    %v1740 = vpop.f32.mrb[0].mxu0
    %v1741 = vpop.f32.mrb[0].mxu0
    %v1742 = vpop.f32.mrb[0].mxu0
    %1743 = vdwg.mxu0
    %1744 = vrot.lane.b32.xlu0 %v210, 64
    %v1745 = vpop.permute.xlu0 %1744
    %v1747 = vsel %vm225, %v1163, 0
    %v1750 = vsel %vm1172, %v1745, 0
    %1752 = vmatprep.subr.bf16.mxu0 0
    %1753 = vmatpush1.bf16.msra.mxu0 %v1750
    %1754 = vmatprep.subr.bf16.mxu0 0
    %1755 = vmatpush1.bf16.msra.mxu0 0
    %1756 = vmatprep.subr.bf16.mxu0 0
    %1757 = vmatpush1.bf16.msra.mxu0 0
    %1758 = vmatprep.subr.bf16.mxu0 0
    %1759 = vmatpush1.bf16.msra.mxu0 0
    %1760 = vmatprep.subr.bf16.mxu0 0
    %1761 = vmatpush1.bf16.msra.mxu0 0
    %1762 = vmatprep.subr.bf16.mxu0 0
    %1763 = vmatpush1.bf16.msra.mxu0 0
    %1764 = vmatprep.subr.bf16.mxu0 0
    %1765 = vmatpush1.bf16.msra.mxu0 0
    %1766 = vmatprep.subr.bf16.mxu0 0
    %1767 = vmatpush1.bf16.msra.mxu0 0
    %1768 = vmatprep.subr.bf16.mxu0 0
    %1769 = vmatpush1.bf16.msra.mxu0 0
    %1770 = vmatprep.subr.bf16.mxu0 0
    %1771 = vmatpush1.bf16.msra.mxu0 0
    %1772 = vmatprep.subr.bf16.mxu0 0
    %1773 = vmatpush1.bf16.msra.mxu0 0
    %1774 = vmatprep.subr.bf16.mxu0 0
    %1775 = vmatpush1.bf16.msra.mxu0 0
    %1776 = vmatprep.subr.bf16.mxu0 0
    %1777 = vmatpush1.bf16.msra.mxu0 0
    %1778 = vmatprep.subr.bf16.mxu0 0
    %1779 = vmatpush1.bf16.msra.mxu0 0
    %1780 = vmatprep.subr.bf16.mxu0 0
    %1781 = vmatpush1.bf16.msra.mxu0 0
    %1782 = vmatprep.subr.bf16.mxu0 0
    %1783 = vmatpush1.bf16.msra.mxu0 0
    %1784 = vmatprep.mubr.bf16.mxu0 0
    %1785 = vmatmul.mubr.bf16.gmra.mrb[0].mxu0 %v1747
    %v1786 = vpop.f32.mrb[0].mxu0
    %v1787 = vadd.f32 0.0, %v1786
    %v1788 = vpop.f32.mrb[0].mxu0
    %v1789 = vpop.f32.mrb[0].mxu0
    %v1790 = vpop.f32.mrb[0].mxu0
    %1791 = vdwg.mxu0
    %1792 = vrot.lane.b32.xlu0 %v211, 64
    %v1793 = vpop.permute.xlu0 %1792
    %v1795 = vsel %vm225, %v1164, 0
    %v1798 = vsel %vm1172, %v1793, 0
    %1800 = vmatprep.subr.bf16.mxu0 0
    %1801 = vmatpush1.bf16.msra.mxu0 %v1798
    %1802 = vmatprep.subr.bf16.mxu0 0
    %1803 = vmatpush1.bf16.msra.mxu0 0
    %1804 = vmatprep.subr.bf16.mxu0 0
    %1805 = vmatpush1.bf16.msra.mxu0 0
    %1806 = vmatprep.subr.bf16.mxu0 0
    %1807 = vmatpush1.bf16.msra.mxu0 0
    %1808 = vmatprep.subr.bf16.mxu0 0
    %1809 = vmatpush1.bf16.msra.mxu0 0
    %1810 = vmatprep.subr.bf16.mxu0 0
    %1811 = vmatpush1.bf16.msra.mxu0 0
    %1812 = vmatprep.subr.bf16.mxu0 0
    %1813 = vmatpush1.bf16.msra.mxu0 0
    %1814 = vmatprep.subr.bf16.mxu0 0
    %1815 = vmatpush1.bf16.msra.mxu0 0
    %1816 = vmatprep.subr.bf16.mxu0 0
    %1817 = vmatpush1.bf16.msra.mxu0 0
    %1818 = vmatprep.subr.bf16.mxu0 0
    %1819 = vmatpush1.bf16.msra.mxu0 0
    %1820 = vmatprep.subr.bf16.mxu0 0
    %1821 = vmatpush1.bf16.msra.mxu0 0
    %1822 = vmatprep.subr.bf16.mxu0 0
    %1823 = vmatpush1.bf16.msra.mxu0 0
    %1824 = vmatprep.subr.bf16.mxu0 0
    %1825 = vmatpush1.bf16.msra.mxu0 0
    %1826 = vmatprep.subr.bf16.mxu0 0
    %1827 = vmatpush1.bf16.msra.mxu0 0
    %1828 = vmatprep.subr.bf16.mxu0 0
    %1829 = vmatpush1.bf16.msra.mxu0 0
    %1830 = vmatprep.subr.bf16.mxu0 0
    %1831 = vmatpush1.bf16.msra.mxu0 0
    %1832 = vmatprep.mubr.bf16.mxu0 0
    %1833 = vmatmul.mubr.bf16.gmra.mrb[0].mxu0 %v1795
    %v1834 = vpop.f32.mrb[0].mxu0
    %v1835 = vadd.f32 0.0, %v1834
    %v1836 = vpop.f32.mrb[0].mxu0
    %v1837 = vpop.f32.mrb[0].mxu0
    %v1838 = vpop.f32.mrb[0].mxu0
    %1839 = vdwg.mxu0
    %1840 = vrot.lane.b32.xlu0 %v212, 64
    %v1841 = vpop.permute.xlu0 %1840
    %v1843 = vsel %vm225, %v1165, 0
    %v1846 = vsel %vm1172, %v1841, 0
    %1848 = vmatprep.subr.bf16.mxu0 0
    %1849 = vmatpush1.bf16.msra.mxu0 %v1846
    %1850 = vmatprep.subr.bf16.mxu0 0
    %1851 = vmatpush1.bf16.msra.mxu0 0
    %1852 = vmatprep.subr.bf16.mxu0 0
    %1853 = vmatpush1.bf16.msra.mxu0 0
    %1854 = vmatprep.subr.bf16.mxu0 0
    %1855 = vmatpush1.bf16.msra.mxu0 0
    %1856 = vmatprep.subr.bf16.mxu0 0
    %1857 = vmatpush1.bf16.msra.mxu0 0
    %1858 = vmatprep.subr.bf16.mxu0 0
    %1859 = vmatpush1.bf16.msra.mxu0 0
    %1860 = vmatprep.subr.bf16.mxu0 0
    %1861 = vmatpush1.bf16.msra.mxu0 0
    %1862 = vmatprep.subr.bf16.mxu0 0
    %1863 = vmatpush1.bf16.msra.mxu0 0
    %1864 = vmatprep.subr.bf16.mxu0 0
    %1865 = vmatpush1.bf16.msra.mxu0 0
    %1866 = vmatprep.subr.bf16.mxu0 0
    %1867 = vmatpush1.bf16.msra.mxu0 0
    %1868 = vmatprep.subr.bf16.mxu0 0
    %1869 = vmatpush1.bf16.msra.mxu0 0
    %1870 = vmatprep.subr.bf16.mxu0 0
    %1871 = vmatpush1.bf16.msra.mxu0 0
    %1872 = vmatprep.subr.bf16.mxu0 0
    %1873 = vmatpush1.bf16.msra.mxu0 0
    %1874 = vmatprep.subr.bf16.mxu0 0
    %1875 = vmatpush1.bf16.msra.mxu0 0
    %1876 = vmatprep.subr.bf16.mxu0 0
    %1877 = vmatpush1.bf16.msra.mxu0 0
    %1878 = vmatprep.subr.bf16.mxu0 0
    %1879 = vmatpush1.bf16.msra.mxu0 0
    %1880 = vmatprep.mubr.bf16.mxu0 0
    %1881 = vmatmul.mubr.bf16.gmra.mrb[0].mxu0 %v1843
    %v1882 = vpop.f32.mrb[0].mxu0
    %v1883 = vadd.f32 0.0, %v1882
    %v1884 = vpop.f32.mrb[0].mxu0
    %v1885 = vpop.f32.mrb[0].mxu0
    %v1886 = vpop.f32.mrb[0].mxu0
    %1887 = vdwg.mxu0
    %1888 = vrot.lane.b32.xlu0 %v213, 64
    %v1889 = vpop.permute.xlu0 %1888
    %v1891 = vsel %vm225, %v1166, 0
    %v1894 = vsel %vm1172, %v1889, 0
    %1896 = vmatprep.subr.bf16.mxu0 0
    %1897 = vmatpush1.bf16.msra.mxu0 %v1894
    %1898 = vmatprep.subr.bf16.mxu0 0
    %1899 = vmatpush1.bf16.msra.mxu0 0
    %1900 = vmatprep.subr.bf16.mxu0 0
    %1901 = vmatpush1.bf16.msra.mxu0 0
    %1902 = vmatprep.subr.bf16.mxu0 0
    %1903 = vmatpush1.bf16.msra.mxu0 0
    %1904 = vmatprep.subr.bf16.mxu0 0
    %1905 = vmatpush1.bf16.msra.mxu0 0
    %1906 = vmatprep.subr.bf16.mxu0 0
    %1907 = vmatpush1.bf16.msra.mxu0 0
    %1908 = vmatprep.subr.bf16.mxu0 0
    %1909 = vmatpush1.bf16.msra.mxu0 0
    %1910 = vmatprep.subr.bf16.mxu0 0
    %1911 = vmatpush1.bf16.msra.mxu0 0
    %1912 = vmatprep.subr.bf16.mxu0 0
    %1913 = vmatpush1.bf16.msra.mxu0 0
    %1914 = vmatprep.subr.bf16.mxu0 0
    %1915 = vmatpush1.bf16.msra.mxu0 0
    %1916 = vmatprep.subr.bf16.mxu0 0
    %1917 = vmatpush1.bf16.msra.mxu0 0
    %1918 = vmatprep.subr.bf16.mxu0 0
    %1919 = vmatpush1.bf16.msra.mxu0 0
    %1920 = vmatprep.subr.bf16.mxu0 0
    %1921 = vmatpush1.bf16.msra.mxu0 0
    %1922 = vmatprep.subr.bf16.mxu0 0
    %1923 = vmatpush1.bf16.msra.mxu0 0
    %1924 = vmatprep.subr.bf16.mxu0 0
    %1925 = vmatpush1.bf16.msra.mxu0 0
    %1926 = vmatprep.subr.bf16.mxu0 0
    %1927 = vmatpush1.bf16.msra.mxu0 0
    %1928 = vmatprep.mubr.bf16.mxu0 0
    %1929 = vmatmul.mubr.bf16.gmra.mrb[0].mxu0 %v1891
    %v1930 = vpop.f32.mrb[0].mxu0
    %v1931 = vadd.f32 0.0, %v1930
    %v1932 = vpop.f32.mrb[0].mxu0
    %v1933 = vpop.f32.mrb[0].mxu0
    %v1934 = vpop.f32.mrb[0].mxu0
    %1935 = vdwg.mxu0
    %v1936 = vrcp.pop %v1105
    %v1937 = vrcp.pop %v1108
    %v1938 = vrcp.pop %v1111
    %v1939 = vrcp.pop %v1114
    %v1940 = vrcp.pop %v1117
    %v1941 = vrcp.pop %v1120
    %v1942 = vrcp.pop %v1123
    %v1943 = vrcp.pop %v1126
    %v1944 = vrcp.pop %v1129
    %v1945 = vrcp.pop %v1132
    %v1946 = vrcp.pop %v1135
    %v1947 = vrcp.pop %v1138
    %v1948 = vrcp.pop %v1141
    %v1949 = vrcp.pop %v1144
    %v1950 = vrcp.pop %v1147
    %v1951 = vrcp.pop %v1150
    %v1952 = vmul.f32 %v1211, %v1936
    %v1953 = vmul.f32 %v1259, %v1937
    %v1954 = vmul.f32 %v1307, %v1938
    %v1955 = vmul.f32 %v1355, %v1939
    %v1956 = vmul.f32 %v1403, %v1940
    %v1957 = vmul.f32 %v1451, %v1941
    %v1958 = vmul.f32 %v1499, %v1942
    %v1959 = vmul.f32 %v1547, %v1943
    %v1960 = vmul.f32 %v1595, %v1944
    %v1961 = vmul.f32 %v1643, %v1945
    %v1962 = vmul.f32 %v1691, %v1946
    %v1963 = vmul.f32 %v1739, %v1947
    %v1964 = vmul.f32 %v1787, %v1948
    %v1965 = vmul.f32 %v1835, %v1949
    %v1966 = vmul.f32 %v1883, %v1950
    %v1967 = vmul.f32 %v1931, %v1951
    %1970 = vrot.lane.b32.xlu0 %v1954, 8
    %v1971 = vpop.permute.xlu0 %1970
    %1972 = vrot.lane.b32.xlu0 %v1955, 8
    %v1973 = vpop.permute.xlu0 %1972
    %1978 = vrot.lane.b32.xlu0 %v1956, 16
    %v1979 = vpop.permute.xlu0 %1978
    %1980 = vrot.lane.b32.xlu0 %v1957, 16
    %v1981 = vpop.permute.xlu0 %1980
    %1986 = vrot.lane.b32.xlu0 %v1958, 24
    %v1987 = vpop.permute.xlu0 %1986
    %1988 = vrot.lane.b32.xlu0 %v1959, 24
    %v1989 = vpop.permute.xlu0 %1988
    %1994 = vrot.lane.b32.xlu0 %v1960, 32
    %v1995 = vpop.permute.xlu0 %1994
    %1996 = vrot.lane.b32.xlu0 %v1961, 32
    %v1997 = vpop.permute.xlu0 %1996
    %2002 = vrot.lane.b32.xlu0 %v1962, 40
    %v2003 = vpop.permute.xlu0 %2002
    %2004 = vrot.lane.b32.xlu0 %v1963, 40
    %v2005 = vpop.permute.xlu0 %2004
    %2010 = vrot.lane.b32.xlu0 %v1964, 48
    %v2011 = vpop.permute.xlu0 %2010
    %2012 = vrot.lane.b32.xlu0 %v1965, 48
    %v2013 = vpop.permute.xlu0 %2012
    %2018 = vrot.lane.b32.xlu0 %v1966, 56
    %v2019 = vpop.permute.xlu0 %2018
    %2020 = vrot.lane.b32.xlu0 %v1967, 56
    %v2021 = vpop.permute.xlu0 %2020
    %v2024 = vsel %vm225, %v1952, %v1971
    %v2025 = vsel %vm225, %v1953, %v1973
    %vm2026 = vcmask 130048
    %v2027 = vsel %vm2026, %v2024, %v1979
    %v2028 = vsel %vm2026, %v2025, %v1981
    %vm2029 = vcmask 195584
    %v2030 = vsel %vm2029, %v2027, %v1987
    %v2031 = vsel %vm2029, %v2028, %v1989
    %v2032 = vsel %vm61, %v2030, %v1995
    %v2033 = vsel %vm61, %v2031, %v1997
    %vm2034 = vcmask 326656
    %v2035 = vsel %vm2034, %v2032, %v2003
    %v2036 = vsel %vm2034, %v2033, %v2005
    %vm2037 = vcmask 392192
    %v2038 = vsel %vm2037, %v2035, %v2011
    %v2039 = vsel %vm2037, %v2036, %v2013
    %vm2040 = vcmask 457728
    %v2041 = vsel %vm2040, %v2038, %v2019
    %v2042 = vsel %vm2040, %v2039, %v2021
    %v2043 = vpack.c.bf16 %v2042, %v2041
    %v2044 = vld [vmem:[%s4] sm:$0xf]
    %v2045 = vld [vmem:[%s4 + $0x4] sm:$0xf]
    %v2046 = vld [vmem:[%s4 + $0x8] sm:$0xf]
    %v2047 = vld [vmem:[%s4 + $0xc] sm:$0xf]
    %v2048 = vld [vmem:[%s4 + $0x10] sm:$0xf]
    %v2049 = vld [vmem:[%s4 + $0x14] sm:$0xf]
    %v2050 = vld [vmem:[%s4 + $0x18] sm:$0xf]
    %v2051 = vld [vmem:[%s4 + $0x1c] sm:$0xf]
    %v2052 = vld [vmem:[%s5] sm:$0x1]
    %v2054 = vlaneseq
    %v2055 = vshrl.u32 %v2054, 7
    %v2056 = vsub.s32 0, %v2055
    %v2057 = vrot.slane %v2052, %v2056
    %v2067 = vunpack.c.l.b16 %v2044
    %v2068 = vunpack.c.l.b16 %v2045
    %v2069 = vunpack.c.l.b16 %v2046
    %v2070 = vunpack.c.l.b16 %v2047
    %v2071 = vunpack.c.l.b16 %v2048
    %v2072 = vunpack.c.l.b16 %v2049
    %v2073 = vunpack.c.l.b16 %v2050
    %v2074 = vunpack.c.l.b16 %v2051
    %v2075 = vpack.c.b16 %v2068, %v2067
    %v2076 = vpack.c.b16 %v2070, %v2069
    %v2077 = vpack.c.b16 %v2072, %v2071
    %v2078 = vpack.c.b16 %v2074, %v2073
    %vm2083 = vcmask 523264
    %v2085 = vsel %vm2083, %v2043, 0
    %2087 = vmatprep.subr.bf16.mxu0 0
    %2088 = vmatpush1.bf16.msra.mxu0 %v2075
    %2089 = vmatprep.subr.bf16.mxu0 0
    %2090 = vmatpush1.bf16.msra.mxu0 %v2076
    %2091 = vmatprep.subr.bf16.mxu0 0
    %2092 = vmatpush1.bf16.msra.mxu0 %v2077
    %2093 = vmatprep.subr.bf16.mxu0 0
    %2094 = vmatpush1.bf16.msra.mxu0 %v2078
    %2095 = vmatprep.subr.bf16.mxu0 0
    %2096 = vmatpush1.bf16.msra.mxu0 0
    %2097 = vmatprep.subr.bf16.mxu0 0
    %2098 = vmatpush1.bf16.msra.mxu0 0
    %2099 = vmatprep.subr.bf16.mxu0 0
    %2100 = vmatpush1.bf16.msra.mxu0 0
    %2101 = vmatprep.subr.bf16.mxu0 0
    %2102 = vmatpush1.bf16.msra.mxu0 0
    %2103 = vmatprep.subr.bf16.mxu0 0
    %2104 = vmatpush1.bf16.msra.mxu0 0
    %2105 = vmatprep.subr.bf16.mxu0 0
    %2106 = vmatpush1.bf16.msra.mxu0 0
    %2107 = vmatprep.subr.bf16.mxu0 0
    %2108 = vmatpush1.bf16.msra.mxu0 0
    %2109 = vmatprep.subr.bf16.mxu0 0
    %2110 = vmatpush1.bf16.msra.mxu0 0
    %2111 = vmatprep.subr.bf16.mxu0 0
    %2112 = vmatpush1.bf16.msra.mxu0 0
    %2113 = vmatprep.subr.bf16.mxu0 0
    %2114 = vmatpush1.bf16.msra.mxu0 0
    %2115 = vmatprep.subr.bf16.mxu0 0
    %2116 = vmatpush1.bf16.msra.mxu0 0
    %2117 = vmatprep.subr.bf16.mxu0 0
    %2118 = vmatpush1.bf16.msra.mxu0 0
    %2119 = vmatprep.mubr.bf16.mxu0 0
    %2120 = vmatmul.mubr.bf16.gmra.mrb[0].mxu0 %v2085
    %v2121 = vpop.f32.mrb[0].mxu0
    %v2122 = vadd.f32 %v2057, %v2121
    %v2123 = vpop.f32.mrb[0].mxu0
    %v2124 = vpop.f32.mrb[0].mxu0
    %v2125 = vadd.f32 %v2057, %v2124
    %v2126 = vpop.f32.mrb[0].mxu0
    %2127 = vdwg.mxu0
    %2128 = vst.msk [vmem:[#allocation5] sm:$0xff] %vm61, %v2122
    %2129 = vst.msk [vmem:[#allocation5 + $0x8] sm:$0xff] %vm61, %v2125
    // Predicated region
    $region30: #{cross_attention.1} parent=1 // pred_check
      _
    $region31: #{cross_attention.1} parent=1 // pred_check_branch
      %2131 = sbr.rel (0) target = $region33
    $region32: #{cross_attention.1} parent=1 // pred_region
      %s2133 = ssub.s32 256, 256
      %2134 = vsyncadd [#allocation4], %s2133
      %s2135 = sshll.u32 [#allocation5], 4
      %s2136 = int_to_ptr.vmem [resolvable:$true] %s2135
      %2141 = dma.vmem_to_hbm [thread:$0]  %s2136, 256, %s6, [#allocation4], 128, 128, 8
    $region33: #{cross_attention.1} parent=1 // pred_fallthru
      _
    // Predicated region
    $region34: #{cross_attention.1} parent=1 // pred_check
      _
    $region35: #{cross_attention.1} parent=1 // pred_check_branch
      %2143 = sbr.rel (0) target = $region37
    $region36: #{cross_attention.1} parent=1 // pred_region
      %2144 = dma.done [#allocation4], 256
    $region37: #{cross_attention.1} parent=1 // pred_fallthru
      _
    %2145 = vsyncpa [#allocation3], 1
    %2146 = vsyncpa [#allocation4], 1

</llo_original>
